<compile_context>
chip_gen: v7x
topology: tpu7x:2x2x1
jax: 0.10.0
libtpu: 0.0.40
codegen_flags: <defaults>
</compile_context>

<pallas_src>
import functools

import jax
import jax.numpy as jnp
from jax.experimental import pallas as pl
from jax.experimental.pallas import tpu as pltpu


def _round_up(x, m):
    return ((x + m - 1) // m) * m


def _span_classifier_kernel(km_ref,   # (1, TQ, H)  main key/query block  [q0, q0+TQ)
                            kl_ref,   # (1, HB, H)  left halo block       [q0-HB, q0)   (clamped at q=0)
                            kr_ref,   # (1, HB, H)  right halo block      [q0+TQ, q0+TQ+HB) (clamped at end)
                            wF_ref,   # (2H, H+L)   fused [[w1a | wc], [w1b | 0]]
                            w2_ref,   # (H, L)      context Linear(H -> L)
                            vec_ref,  # (5, H+L)    rows: [b1|bc] | wa | gamma | beta | b2
                            out_ref,  # (1, TQ, L)
                            *, S, HALO, HB, TQ, H, L, ctx_ratio, ln_eps):
    W = 2 * HALO + 1
    HL = H + L
    q0 = pl.program_id(1) * TQ                         # first global query index of this tile

    # key slab: [left halo | main | right halo]; slab row p <-> global token (q0 - HB + p).
    kcat_raw = jnp.concatenate([kl_ref[0], km_ref[0], kr_ref[0]], axis=0)   # (TQ+2HB, H)

    r_idx = jax.lax.broadcasted_iota(jnp.int32, (TQ + 2 * HB, 1), 0)
    gidx = q0 - HB + r_idx                                                  # intended global index
    key_valid = (gidx >= 0) & (gidx < S)
    # Zero invalid/clamped rows: replaces the old host-side zero padding and guards the
    # banded accumulation against stale-VMEM garbage in partial edge blocks.
    kcat = jnp.where(key_valid, kcat_raw, 0.0)

    # ---- per-key attention score on the VPU (an N=1 MXU matmul would be wasted) ----
    # span_attention bias omitted: constant shift, a no-op under the windowed softmax;
    # span_query is unused in the reference forward().
    wa_row = vec_ref[1:2, :H]                                               # (1, H)
    s_all = jnp.sum(kcat * wa_row, axis=-1, keepdims=True)                  # (TQ+2HB, 1)
    s_masked = jnp.where(key_valid, s_all, -1e30)

    # ---- banded softmax: O(TQ*W*H), no (S,S) intermediates ----
    s_sh = [s_masked[HB - HALO + w: HB - HALO + w + TQ] for w in range(W)]  # W x (TQ, 1)
    m = s_sh[0]
    for w in range(1, W):
        m = jnp.maximum(m, s_sh[w])

    den = jnp.zeros((TQ, 1), jnp.float32)
    num = jnp.zeros((TQ, H), jnp.float32)
    for w in range(W):
        e_w = jnp.where(s_sh[w] > -1e29, jnp.exp(s_sh[w] - m), 0.0)
        den = den + e_w
        num = num + e_w * kcat[HB - HALO + w: HB - HALO + w + TQ, :]
    wctx = num / jnp.maximum(den, 1e-30)                                    # (TQ, H)

    xq = kcat[HB:HB + TQ, :]                                                # (TQ, H) query tokens

    # ---- single fused MXU matmul: [xq | wctx] @ [[w1a | wc], [w1b | 0]] + [b1 | bc] ----
    cat = jnp.concatenate([xq, wctx], axis=-1)                              # (TQ, 2H)
    y = jnp.dot(cat, wF_ref[...], preferred_element_type=jnp.float32) + vec_ref[0:1, :HL]
    pre = y[:, :H]                                                          # pre-LayerNorm hidden
    base = y[:, H:HL]                                                       # base (classifier) logits

    # LayerNorm(H): biased variance, torch eps
    mu = jnp.mean(pre, axis=-1, keepdims=True)
    var = jnp.mean((pre - mu) * (pre - mu), axis=-1, keepdims=True)
    ln = (pre - mu) * jax.lax.rsqrt(var + ln_eps) * vec_ref[2:3, :H] + vec_ref[3:4, :H]

    # exact GELU (torch nn.GELU default)
    ge = 0.5 * ln * (1.0 + jax.lax.erf(ln * 0.7071067811865476))

    ctx = jnp.dot(ge, w2_ref[...], preferred_element_type=jnp.float32) + vec_ref[4:5, :L]

    # ---- blend; analytic window count (no (S,S) mask) ----
    t_idx = jax.lax.broadcasted_iota(jnp.int32, (TQ, 1), 0)
    i_idx = q0 + t_idx
    cnt = jnp.minimum(S - 1, i_idx + HALO) - jnp.maximum(0, i_idx - HALO) + 1

    blended = (1.0 - ctx_ratio) * base + ctx_ratio * ctx
    out_ref[0] = jnp.where(cnt > 1, blended, base)                          # (TQ, L) store


def context_aware_span_classifier(seq, params, *, max_span_length=5, context_ratio=0.5,
                                  tile_q=512):
    B, S, H = seq.shape
    L = params["wc"].shape[1]
    HALO = int(max_span_length)
    f32 = jnp.float32
    seq = seq.astype(f32)

    HB = max(8, _round_up(HALO, 8))                       # halo block rows (multiple of 8, >= HALO)
    TQ = _round_up(min(int(tile_q), _round_up(S, 8)), HB)  # query tile; multiple of HB
    num_q = -(-S // TQ)                                   # ceil-div; last tile may be partial (masked)
    nqb = TQ // HB                                        # HB-blocks per query tile
    last_blk = max(-(-S // HB) - 1, 0)                    # last valid HB-block index of seq

    # ---- fused weights (built once on host; all tiny) ----
    wc = params["wc"].astype(f32)                         # (H, L)
    bc = params["bc"].reshape(1, L).astype(f32)
    w1a = params["w1a"].astype(f32)                       # (H, H) token half of Linear(2H->H)
    w1b = params["w1b"].astype(f32)                       # (H, H) context half
    b1 = params["b1"].reshape(1, H).astype(f32)
    gamma = params["gamma"].reshape(1, H).astype(f32)
    beta = params["beta"].reshape(1, H).astype(f32)
    w2 = params["w2"].astype(f32)                         # (H, L)
    b2 = params["b2"].reshape(1, L).astype(f32)
    wa = params["wa"].reshape(1, H).astype(f32)

    W_fused = jnp.concatenate(
        [jnp.concatenate([w1a, wc], axis=1),
         jnp.concatenate([w1b, jnp.zeros((H, L), f32)], axis=1)], axis=0)   # (2H, H+L)
    bias_fused = jnp.concatenate([b1, bc], axis=1)                          # (1, H+L)

    HL = H + L

    def _vrow(v):
        return jnp.zeros((1, HL), f32).at[:, :v.shape[1]].set(v)

    vec = jnp.concatenate([_vrow(bias_fused), _vrow(wa), _vrow(gamma),
                           _vrow(beta), _vrow(b2)], axis=0)                 # (5, H+L)

    kernel = functools.partial(_span_classifier_kernel,
                               S=S, HALO=HALO, HB=HB, TQ=TQ, H=H, L=L,
                               ctx_ratio=float(context_ratio), ln_eps=1e-5)

    def _const(shape):
        nd = len(shape)
        return pl.BlockSpec(shape, lambda b, q, _nd=nd: (0,) * _nd)

    in_specs = [
        # main key/query rows [q0, q0+TQ)
        pl.BlockSpec((1, TQ, H), lambda b, q: (b, q, 0)),
        # left halo rows [q0-HB, q0)  (clamped to block 0 at q=0; content then fully masked)
        pl.BlockSpec((1, HB, H), lambda b, q: (b, jnp.maximum(q * nqb - 1, 0), 0)),
        # right halo rows [q0+TQ, q0+TQ+HB)  (clamped to the last block; content then fully masked)
        pl.BlockSpec((1, HB, H), lambda b, q: (b, jnp.minimum((q + 1) * nqb, last_blk), 0)),
        _const(W_fused.shape),
        _const(w2.shape),
        _const(vec.shape),
    ]

    out = pl.pallas_call(
        kernel,
        out_shape=jax.ShapeDtypeStruct((B, S, L), f32),     # compact output: no pad, no post-slice
        grid=(B, num_q),
        in_specs=in_specs,
        out_specs=pl.BlockSpec((1, TQ, L), lambda b, q: (b, q, 0)),
        compiler_params=pltpu.CompilerParams(
            dimension_semantics=("parallel", "parallel"),
            vmem_limit_bytes=32 * 1024 * 1024),              # actual need is a few MiB
    )(seq, seq, seq, W_fused, w2, vec)
    return out


def _reference(seq, params, max_span, ratio):
    """Pure-JAX reference mirroring the PyTorch forward (dense, small shapes only)."""
    hp = jax.lax.Precision.HIGHEST
    B, S, H = seq.shape
    base = jnp.einsum("bsh,hl->bsl", seq, params["wc"], precision=hp) + params["bc"]
    scores = jnp.einsum("bsh,ho->bso", seq, params["wa"], precision=hp)[..., 0]      # (B, S)
    i = jnp.arange(S)[:, None]
    j = jnp.arange(S)[None, :]
    mask = (j >= i - max_span) & (j <= i + max_span)
    logits = jnp.where(mask[None, :, :], scores[:, None, :], -jnp.inf)
    attn = jax.nn.softmax(logits, axis=-1)
    wctx = jnp.einsum("bij,bjh->bih", attn, seq, precision=hp)
    pre = (jnp.einsum("bsh,hk->bsk", seq, params["w1a"], precision=hp)
           + jnp.einsum("bsh,hk->bsk", wctx, params["w1b"], precision=hp)
           + params["b1"])
    mu = pre.mean(-1, keepdims=True)
    var = ((pre - mu) ** 2).mean(-1, keepdims=True)
    ln = (pre - mu) * jax.lax.rsqrt(var + 1e-5) * params["gamma"] + params["beta"]
    ge = 0.5 * ln * (1.0 + jax.lax.erf(ln * 0.7071067811865476))
    ctx = jnp.einsum("bsh,hl->bsl", ge, params["w2"], precision=hp) + params["b2"]
    cnt = jnp.sum(mask, axis=-1)
    blended = (1.0 - ratio) * base + ratio * ctx
    return jnp.where((cnt > 1)[None, :, None], blended, base)


if __name__ == "__main__":
    key = jax.random.PRNGKey(0)
    B, S, H, L = 2, 8, 32, 6          # batch, seq_length, hidden_size, num_labels
    ks = jax.random.split(key, 10)

    seq = jax.random.normal(ks[0], (B, S, H), jnp.float32)

    params = {
        # classifier: Linear(H, L)
        "wc":    jax.random.normal(ks[1], (H, L), jnp.float32) * 0.05,
        "bc":    jax.random.normal(ks[2], (1, L), jnp.float32) * 0.05,
        # span_attention: Linear(H, 1)  (bias dropped; constant under the window softmax)
        "wa":    jax.random.normal(ks[3], (H, 1), jnp.float32) * 0.05,
        # context_layer[0]: Linear(2H, H) split into token half and ctx half
        "w1a":   jax.random.normal(ks[4], (H, H), jnp.float32) * 0.05,
        "w1b":   jax.random.normal(ks[5], (H, H), jnp.float32) * 0.05,
        "b1":    jax.random.normal(ks[6], (1, H), jnp.float32) * 0.05,
        # context_layer[1]: LayerNorm(H) default init
        "gamma": jnp.ones((1, H), jnp.float32),
        "beta":  jnp.zeros((1, H), jnp.float32),
        # context_layer[3]: Linear(H, L)
        "w2":    jax.random.normal(ks[7], (H, L), jnp.float32) * 0.05,
        "b2":    jax.random.normal(ks[8], (1, L), jnp.float32) * 0.05,
    }

    # --- canonical small-shape test ---
    fn = jax.jit(functools.partial(context_aware_span_classifier,
                                   max_span_length=5, context_ratio=0.5))
    out = fn(seq, params)
    jax.block_until_ready(out)
    assert out.shape == (B, S, L) and out.dtype == jnp.float32
    ref = _reference(seq, params, 5, 0.5)
    err = float(jnp.max(jnp.abs(out - ref)))
    assert err < 5e-3, f"max abs err vs reference: {err}"

    # --- multi-tile / halo-path test: tile_q=16 forces halos across tile boundaries and
    #     a partial last tile (S=40 -> tiles of 16,16,8) ---
    S2 = 40
    seq2 = jax.random.normal(ks[9], (B, S2, H), jnp.float32)
    fn2 = jax.jit(functools.partial(context_aware_span_classifier,
                                    max_span_length=5, context_ratio=0.5, tile_q=16))
    out2 = fn2(seq2, params)
    jax.block_until_ready(out2)
    assert out2.shape == (B, S2, L)
    ref2 = _reference(seq2, params, 5, 0.5)
    err2 = float(jnp.max(jnp.abs(out2 - ref2)))
    assert err2 < 5e-3, f"multi-tile max abs err vs reference: {err2}"

    print("KERNEL_OK")
</pallas_src>

<mosaic_0001>
module attributes {stable_mosaic.version = 11 : i64} {
  func.func @_span_classifier_kernel(%arg0: i32, %arg1: i32, %arg2: memref<1x8x32xf32, #tpu.memory_space<vmem>>, %arg3: memref<1x8x32xf32, #tpu.memory_space<vmem>>, %arg4: memref<1x8x32xf32, #tpu.memory_space<vmem>>, %arg5: memref<64x38xf32, #tpu.memory_space<vmem>>, %arg6: memref<32x6xf32, #tpu.memory_space<vmem>>, %arg7: memref<5x38xf32, #tpu.memory_space<vmem>>, %arg8: memref<1x8x6xf32, #tpu.memory_space<vmem>>) attributes {dimension_semantics = [#tpu.dimension_semantics<parallel>, #tpu.dimension_semantics<parallel>], iteration_bounds = array<i64: 2, 1>, scalar_prefetch = 0 : i64, scratch_operands = 0 : i64, tpu.core_type = #tpu.core_type<tc>, window_params = [{transform_indices = @transform_0, window_bounds = array<i64: 1, 8, 32>}, {transform_indices = @transform_1, window_bounds = array<i64: 1, 8, 32>}, {transform_indices = @transform_2, window_bounds = array<i64: 1, 8, 32>}, {pipeline_mode = #tpu.pipeline_mode<synchronous>, transform_indices = @transform_3, window_bounds = array<i64: 64, 38>}, {pipeline_mode = #tpu.pipeline_mode<synchronous>, transform_indices = @transform_4, window_bounds = array<i64: 32, 6>}, {pipeline_mode = #tpu.pipeline_mode<synchronous>, transform_indices = @transform_5, window_bounds = array<i64: 5, 38>}, {transform_indices = @transform_6, window_bounds = array<i64: 1, 8, 6>}]} {
    %c8_i32 = arith.constant 8 : i32
    %0 = arith.muli %arg1, %c8_i32 : i32
    %c0 = arith.constant 0 : index
    %c0_0 = arith.constant 0 : index
    %c0_1 = arith.constant 0 : index
    %1 = vector.load %arg3[%c0, %c0_0, %c0_1] : memref<1x8x32xf32, #tpu.memory_space<vmem>>, vector<1x8x32xf32>
    %2 = vector.shape_cast %1 : vector<1x8x32xf32> to vector<8x32xf32>
    %c0_2 = arith.constant 0 : index
    %c0_3 = arith.constant 0 : index
    %c0_4 = arith.constant 0 : index
    %3 = vector.load %arg2[%c0_2, %c0_3, %c0_4] : memref<1x8x32xf32, #tpu.memory_space<vmem>>, vector<1x8x32xf32>
    %4 = vector.shape_cast %3 : vector<1x8x32xf32> to vector<8x32xf32>
    %c0_5 = arith.constant 0 : index
    %c0_6 = arith.constant 0 : index
    %c0_7 = arith.constant 0 : index
    %5 = vector.load %arg4[%c0_5, %c0_6, %c0_7] : memref<1x8x32xf32, #tpu.memory_space<vmem>>, vector<1x8x32xf32>
    %6 = vector.shape_cast %5 : vector<1x8x32xf32> to vector<8x32xf32>
    %7 = tpu.concatenate %2, %4, %6 in 0 : vector<8x32xf32>, vector<8x32xf32>, vector<8x32xf32> -> vector<24x32xf32>
    %8 = tpu.iota {dimensions = array<i32: 0>} : vector<24x1xi32>
    %c8_i32_8 = arith.constant 8 : i32
    %9 = arith.subi %0, %c8_i32_8 : i32
    %10 = vector.broadcast %9 : i32 to vector<24x1xi32>
    %11 = arith.addi %10, %8 : vector<24x1xi32>
    %c0_i32 = arith.constant 0 : i32
    %12 = vector.broadcast %c0_i32 : i32 to vector<24x1xi32>
    %13 = arith.cmpi sge, %11, %12 : vector<24x1xi32>
    %c8_i32_9 = arith.constant 8 : i32
    %14 = vector.broadcast %c8_i32_9 : i32 to vector<24x1xi32>
    %15 = arith.cmpi slt, %11, %14 : vector<24x1xi32>
    %16 = arith.andi %13, %15 : vector<24x1xi1>
    %cst = arith.constant 0.000000e+00 : f32
    %17 = vector.shape_cast %16 : vector<24x1xi1> to vector<24x1xi1>
    %18 = vector.broadcast %17 : vector<24x1xi1> to vector<24x32xi1>
    %19 = vector.broadcast %cst : f32 to vector<24x32xf32>
    %20 = arith.select %18, %7, %19 : vector<24x32xi1>, vector<24x32xf32>
    %c1 = arith.constant 1 : index
    %c0_10 = arith.constant 0 : index
    %21 = vector.load %arg7[%c1, %c0_10] : memref<5x38xf32, #tpu.memory_space<vmem>>, vector<1x32xf32>
    %22 = vector.broadcast %21 : vector<1x32xf32> to vector<24x32xf32>
    %23 = arith.mulf %20, %22 : vector<24x32xf32>
    %cst_11 = arith.constant dense<0.000000e+00> : vector<24xf32>
    %24 = vector.multi_reduction <add>, %23, %cst_11 [1] : vector<24x32xf32> to vector<24xf32>
    %25 = vector.shape_cast %24 : vector<24xf32> to vector<24x1xf32>
    %cst_12 = arith.constant -1.000000e+30 : f32
    %26 = vector.broadcast %cst_12 : f32 to vector<24x1xf32>
    %27 = arith.select %16, %25, %26 : vector<24x1xi1>, vector<24x1xf32>
    %28 = vector.extract_strided_slice %27 {offsets = [3, 0], sizes = [8, 1], strides = [1, 1]} : vector<24x1xf32> to vector<8x1xf32>
    %29 = vector.extract_strided_slice %27 {offsets = [4, 0], sizes = [8, 1], strides = [1, 1]} : vector<24x1xf32> to vector<8x1xf32>
    %30 = vector.extract_strided_slice %27 {offsets = [5, 0], sizes = [8, 1], strides = [1, 1]} : vector<24x1xf32> to vector<8x1xf32>
    %31 = vector.extract_strided_slice %27 {offsets = [6, 0], sizes = [8, 1], strides = [1, 1]} : vector<24x1xf32> to vector<8x1xf32>
    %32 = vector.extract_strided_slice %27 {offsets = [7, 0], sizes = [8, 1], strides = [1, 1]} : vector<24x1xf32> to vector<8x1xf32>
    %33 = vector.extract_strided_slice %27 {offsets = [8, 0], sizes = [8, 1], strides = [1, 1]} : vector<24x1xf32> to vector<8x1xf32>
    %34 = vector.extract_strided_slice %27 {offsets = [9, 0], sizes = [8, 1], strides = [1, 1]} : vector<24x1xf32> to vector<8x1xf32>
    %35 = vector.extract_strided_slice %27 {offsets = [10, 0], sizes = [8, 1], strides = [1, 1]} : vector<24x1xf32> to vector<8x1xf32>
    %36 = vector.extract_strided_slice %27 {offsets = [11, 0], sizes = [8, 1], strides = [1, 1]} : vector<24x1xf32> to vector<8x1xf32>
    %37 = vector.extract_strided_slice %27 {offsets = [12, 0], sizes = [8, 1], strides = [1, 1]} : vector<24x1xf32> to vector<8x1xf32>
    %38 = vector.extract_strided_slice %27 {offsets = [13, 0], sizes = [8, 1], strides = [1, 1]} : vector<24x1xf32> to vector<8x1xf32>
    %39 = arith.maximumf %28, %29 : vector<8x1xf32>
    %40 = arith.maximumf %39, %30 : vector<8x1xf32>
    %41 = arith.maximumf %40, %31 : vector<8x1xf32>
    %42 = arith.maximumf %41, %32 : vector<8x1xf32>
    %43 = arith.maximumf %42, %33 : vector<8x1xf32>
    %44 = arith.maximumf %43, %34 : vector<8x1xf32>
    %45 = arith.maximumf %44, %35 : vector<8x1xf32>
    %46 = arith.maximumf %45, %36 : vector<8x1xf32>
    %47 = arith.maximumf %46, %37 : vector<8x1xf32>
    %48 = arith.maximumf %47, %38 : vector<8x1xf32>
    %cst_13 = arith.constant 0.000000e+00 : f32
    %49 = vector.broadcast %cst_13 : f32 to vector<8x1xf32>
    %cst_14 = arith.constant 0.000000e+00 : f32
    %50 = vector.broadcast %cst_14 : f32 to vector<8x32xf32>
    %cst_15 = arith.constant -1.000000e+29 : f32
    %51 = vector.broadcast %cst_15 : f32 to vector<8x1xf32>
    %52 = arith.cmpf ogt, %28, %51 : vector<8x1xf32>
    %53 = arith.subf %28, %48 : vector<8x1xf32>
    %54 = math.exp %53 : vector<8x1xf32>
    %cst_16 = arith.constant 0.000000e+00 : f32
    %55 = vector.broadcast %cst_16 : f32 to vector<8x1xf32>
    %56 = arith.select %52, %54, %55 : vector<8x1xi1>, vector<8x1xf32>
    %57 = arith.addf %49, %56 : vector<8x1xf32>
    %58 = vector.extract_strided_slice %20 {offsets = [3, 0], sizes = [8, 32], strides = [1, 1]} : vector<24x32xf32> to vector<8x32xf32>
    %59 = vector.broadcast %56 : vector<8x1xf32> to vector<8x32xf32>
    %60 = arith.mulf %59, %58 : vector<8x32xf32>
    %61 = arith.addf %50, %60 : vector<8x32xf32>
    %cst_17 = arith.constant -1.000000e+29 : f32
    %62 = vector.broadcast %cst_17 : f32 to vector<8x1xf32>
    %63 = arith.cmpf ogt, %29, %62 : vector<8x1xf32>
    %64 = arith.subf %29, %48 : vector<8x1xf32>
    %65 = math.exp %64 : vector<8x1xf32>
    %cst_18 = arith.constant 0.000000e+00 : f32
    %66 = vector.broadcast %cst_18 : f32 to vector<8x1xf32>
    %67 = arith.select %63, %65, %66 : vector<8x1xi1>, vector<8x1xf32>
    %68 = arith.addf %57, %67 : vector<8x1xf32>
    %69 = vector.extract_strided_slice %20 {offsets = [4, 0], sizes = [8, 32], strides = [1, 1]} : vector<24x32xf32> to vector<8x32xf32>
    %70 = vector.broadcast %67 : vector<8x1xf32> to vector<8x32xf32>
    %71 = arith.mulf %70, %69 : vector<8x32xf32>
    %72 = arith.addf %61, %71 : vector<8x32xf32>
    %cst_19 = arith.constant -1.000000e+29 : f32
    %73 = vector.broadcast %cst_19 : f32 to vector<8x1xf32>
    %74 = arith.cmpf ogt, %30, %73 : vector<8x1xf32>
    %75 = arith.subf %30, %48 : vector<8x1xf32>
    %76 = math.exp %75 : vector<8x1xf32>
    %cst_20 = arith.constant 0.000000e+00 : f32
    %77 = vector.broadcast %cst_20 : f32 to vector<8x1xf32>
    %78 = arith.select %74, %76, %77 : vector<8x1xi1>, vector<8x1xf32>
    %79 = arith.addf %68, %78 : vector<8x1xf32>
    %80 = vector.extract_strided_slice %20 {offsets = [5, 0], sizes = [8, 32], strides = [1, 1]} : vector<24x32xf32> to vector<8x32xf32>
    %81 = vector.broadcast %78 : vector<8x1xf32> to vector<8x32xf32>
    %82 = arith.mulf %81, %80 : vector<8x32xf32>
    %83 = arith.addf %72, %82 : vector<8x32xf32>
    %cst_21 = arith.constant -1.000000e+29 : f32
    %84 = vector.broadcast %cst_21 : f32 to vector<8x1xf32>
    %85 = arith.cmpf ogt, %31, %84 : vector<8x1xf32>
    %86 = arith.subf %31, %48 : vector<8x1xf32>
    %87 = math.exp %86 : vector<8x1xf32>
    %cst_22 = arith.constant 0.000000e+00 : f32
    %88 = vector.broadcast %cst_22 : f32 to vector<8x1xf32>
    %89 = arith.select %85, %87, %88 : vector<8x1xi1>, vector<8x1xf32>
    %90 = arith.addf %79, %89 : vector<8x1xf32>
    %91 = vector.extract_strided_slice %20 {offsets = [6, 0], sizes = [8, 32], strides = [1, 1]} : vector<24x32xf32> to vector<8x32xf32>
    %92 = vector.broadcast %89 : vector<8x1xf32> to vector<8x32xf32>
    %93 = arith.mulf %92, %91 : vector<8x32xf32>
    %94 = arith.addf %83, %93 : vector<8x32xf32>
    %cst_23 = arith.constant -1.000000e+29 : f32
    %95 = vector.broadcast %cst_23 : f32 to vector<8x1xf32>
    %96 = arith.cmpf ogt, %32, %95 : vector<8x1xf32>
    %97 = arith.subf %32, %48 : vector<8x1xf32>
    %98 = math.exp %97 : vector<8x1xf32>
    %cst_24 = arith.constant 0.000000e+00 : f32
    %99 = vector.broadcast %cst_24 : f32 to vector<8x1xf32>
    %100 = arith.select %96, %98, %99 : vector<8x1xi1>, vector<8x1xf32>
    %101 = arith.addf %90, %100 : vector<8x1xf32>
    %102 = vector.extract_strided_slice %20 {offsets = [7, 0], sizes = [8, 32], strides = [1, 1]} : vector<24x32xf32> to vector<8x32xf32>
    %103 = vector.broadcast %100 : vector<8x1xf32> to vector<8x32xf32>
    %104 = arith.mulf %103, %102 : vector<8x32xf32>
    %105 = arith.addf %94, %104 : vector<8x32xf32>
    %cst_25 = arith.constant -1.000000e+29 : f32
    %106 = vector.broadcast %cst_25 : f32 to vector<8x1xf32>
    %107 = arith.cmpf ogt, %33, %106 : vector<8x1xf32>
    %108 = arith.subf %33, %48 : vector<8x1xf32>
    %109 = math.exp %108 : vector<8x1xf32>
    %cst_26 = arith.constant 0.000000e+00 : f32
    %110 = vector.broadcast %cst_26 : f32 to vector<8x1xf32>
    %111 = arith.select %107, %109, %110 : vector<8x1xi1>, vector<8x1xf32>
    %112 = arith.addf %101, %111 : vector<8x1xf32>
    %113 = vector.extract_strided_slice %20 {offsets = [8, 0], sizes = [8, 32], strides = [1, 1]} : vector<24x32xf32> to vector<8x32xf32>
    %114 = vector.broadcast %111 : vector<8x1xf32> to vector<8x32xf32>
    %115 = arith.mulf %114, %113 : vector<8x32xf32>
    %116 = arith.addf %105, %115 : vector<8x32xf32>
    %cst_27 = arith.constant -1.000000e+29 : f32
    %117 = vector.broadcast %cst_27 : f32 to vector<8x1xf32>
    %118 = arith.cmpf ogt, %34, %117 : vector<8x1xf32>
    %119 = arith.subf %34, %48 : vector<8x1xf32>
    %120 = math.exp %119 : vector<8x1xf32>
    %cst_28 = arith.constant 0.000000e+00 : f32
    %121 = vector.broadcast %cst_28 : f32 to vector<8x1xf32>
    %122 = arith.select %118, %120, %121 : vector<8x1xi1>, vector<8x1xf32>
    %123 = arith.addf %112, %122 : vector<8x1xf32>
    %124 = vector.extract_strided_slice %20 {offsets = [9, 0], sizes = [8, 32], strides = [1, 1]} : vector<24x32xf32> to vector<8x32xf32>
    %125 = vector.broadcast %122 : vector<8x1xf32> to vector<8x32xf32>
    %126 = arith.mulf %125, %124 : vector<8x32xf32>
    %127 = arith.addf %116, %126 : vector<8x32xf32>
    %cst_29 = arith.constant -1.000000e+29 : f32
    %128 = vector.broadcast %cst_29 : f32 to vector<8x1xf32>
    %129 = arith.cmpf ogt, %35, %128 : vector<8x1xf32>
    %130 = arith.subf %35, %48 : vector<8x1xf32>
    %131 = math.exp %130 : vector<8x1xf32>
    %cst_30 = arith.constant 0.000000e+00 : f32
    %132 = vector.broadcast %cst_30 : f32 to vector<8x1xf32>
    %133 = arith.select %129, %131, %132 : vector<8x1xi1>, vector<8x1xf32>
    %134 = arith.addf %123, %133 : vector<8x1xf32>
    %135 = vector.extract_strided_slice %20 {offsets = [10, 0], sizes = [8, 32], strides = [1, 1]} : vector<24x32xf32> to vector<8x32xf32>
    %136 = vector.broadcast %133 : vector<8x1xf32> to vector<8x32xf32>
    %137 = arith.mulf %136, %135 : vector<8x32xf32>
    %138 = arith.addf %127, %137 : vector<8x32xf32>
    %cst_31 = arith.constant -1.000000e+29 : f32
    %139 = vector.broadcast %cst_31 : f32 to vector<8x1xf32>
    %140 = arith.cmpf ogt, %36, %139 : vector<8x1xf32>
    %141 = arith.subf %36, %48 : vector<8x1xf32>
    %142 = math.exp %141 : vector<8x1xf32>
    %cst_32 = arith.constant 0.000000e+00 : f32
    %143 = vector.broadcast %cst_32 : f32 to vector<8x1xf32>
    %144 = arith.select %140, %142, %143 : vector<8x1xi1>, vector<8x1xf32>
    %145 = arith.addf %134, %144 : vector<8x1xf32>
    %146 = vector.extract_strided_slice %20 {offsets = [11, 0], sizes = [8, 32], strides = [1, 1]} : vector<24x32xf32> to vector<8x32xf32>
    %147 = vector.broadcast %144 : vector<8x1xf32> to vector<8x32xf32>
    %148 = arith.mulf %147, %146 : vector<8x32xf32>
    %149 = arith.addf %138, %148 : vector<8x32xf32>
    %cst_33 = arith.constant -1.000000e+29 : f32
    %150 = vector.broadcast %cst_33 : f32 to vector<8x1xf32>
    %151 = arith.cmpf ogt, %37, %150 : vector<8x1xf32>
    %152 = arith.subf %37, %48 : vector<8x1xf32>
    %153 = math.exp %152 : vector<8x1xf32>
    %cst_34 = arith.constant 0.000000e+00 : f32
    %154 = vector.broadcast %cst_34 : f32 to vector<8x1xf32>
    %155 = arith.select %151, %153, %154 : vector<8x1xi1>, vector<8x1xf32>
    %156 = arith.addf %145, %155 : vector<8x1xf32>
    %157 = vector.extract_strided_slice %20 {offsets = [12, 0], sizes = [8, 32], strides = [1, 1]} : vector<24x32xf32> to vector<8x32xf32>
    %158 = vector.broadcast %155 : vector<8x1xf32> to vector<8x32xf32>
    %159 = arith.mulf %158, %157 : vector<8x32xf32>
    %160 = arith.addf %149, %159 : vector<8x32xf32>
    %cst_35 = arith.constant -1.000000e+29 : f32
    %161 = vector.broadcast %cst_35 : f32 to vector<8x1xf32>
    %162 = arith.cmpf ogt, %38, %161 : vector<8x1xf32>
    %163 = arith.subf %38, %48 : vector<8x1xf32>
    %164 = math.exp %163 : vector<8x1xf32>
    %cst_36 = arith.constant 0.000000e+00 : f32
    %165 = vector.broadcast %cst_36 : f32 to vector<8x1xf32>
    %166 = arith.select %162, %164, %165 : vector<8x1xi1>, vector<8x1xf32>
    %167 = arith.addf %156, %166 : vector<8x1xf32>
    %168 = vector.extract_strided_slice %20 {offsets = [13, 0], sizes = [8, 32], strides = [1, 1]} : vector<24x32xf32> to vector<8x32xf32>
    %169 = vector.broadcast %166 : vector<8x1xf32> to vector<8x32xf32>
    %170 = arith.mulf %169, %168 : vector<8x32xf32>
    %171 = arith.addf %160, %170 : vector<8x32xf32>
    %cst_37 = arith.constant 1.000000e-30 : f32
    %172 = vector.broadcast %cst_37 : f32 to vector<8x1xf32>
    %173 = arith.maximumf %167, %172 : vector<8x1xf32>
    %174 = vector.broadcast %173 : vector<8x1xf32> to vector<8x32xf32>
    %175 = arith.divf %171, %174 : vector<8x32xf32>
    %176 = vector.extract_strided_slice %20 {offsets = [8, 0], sizes = [8, 32], strides = [1, 1]} : vector<24x32xf32> to vector<8x32xf32>
    %177 = tpu.concatenate %176, %175 in 1 : vector<8x32xf32>, vector<8x32xf32> -> vector<8x64xf32>
    %c0_38 = arith.constant 0 : index
    %c0_39 = arith.constant 0 : index
    %178 = vector.load %arg5[%c0_38, %c0_39] : memref<64x38xf32, #tpu.memory_space<vmem>>, vector<64x38xf32>
    %cst_40 = arith.constant dense<0.000000e+00> : vector<8x38xf32>
    %179 = tpu.matmul %177, %178, %cst_40 {dimension_numbers = #tpu.dot_dimension_numbers<[1], [0], [0], [1], [0, 0, 1, 1], [], []>} : vector<8x64xf32>, vector<64x38xf32>, vector<8x38xf32> -> vector<8x38xf32>
    %c0_41 = arith.constant 0 : index
    %c0_42 = arith.constant 0 : index
    %180 = vector.load %arg7[%c0_41, %c0_42] : memref<5x38xf32, #tpu.memory_space<vmem>>, vector<1x38xf32>
    %181 = vector.broadcast %180 : vector<1x38xf32> to vector<8x38xf32>
    %182 = arith.addf %179, %181 : vector<8x38xf32>
    %183 = vector.extract_strided_slice %182 {offsets = [0, 0], sizes = [8, 32], strides = [1, 1]} : vector<8x38xf32> to vector<8x32xf32>
    %184 = vector.extract_strided_slice %182 {offsets = [0, 32], sizes = [8, 6], strides = [1, 1]} : vector<8x38xf32> to vector<8x6xf32>
    %cst_43 = arith.constant dense<0.000000e+00> : vector<8xf32>
    %185 = vector.multi_reduction <add>, %183, %cst_43 [1] : vector<8x32xf32> to vector<8xf32>
    %186 = vector.shape_cast %185 : vector<8xf32> to vector<8x1xf32>
    %cst_44 = arith.constant 3.200000e+01 : f32
    %187 = vector.broadcast %cst_44 : f32 to vector<8x1xf32>
    %188 = arith.divf %186, %187 : vector<8x1xf32>
    %189 = vector.broadcast %188 : vector<8x1xf32> to vector<8x32xf32>
    %190 = arith.subf %183, %189 : vector<8x32xf32>
    %191 = vector.broadcast %188 : vector<8x1xf32> to vector<8x32xf32>
    %192 = arith.subf %183, %191 : vector<8x32xf32>
    %193 = arith.mulf %190, %192 : vector<8x32xf32>
    %cst_45 = arith.constant dense<0.000000e+00> : vector<8xf32>
    %194 = vector.multi_reduction <add>, %193, %cst_45 [1] : vector<8x32xf32> to vector<8xf32>
    %195 = vector.shape_cast %194 : vector<8xf32> to vector<8x1xf32>
    %cst_46 = arith.constant 3.200000e+01 : f32
    %196 = vector.broadcast %cst_46 : f32 to vector<8x1xf32>
    %197 = arith.divf %195, %196 : vector<8x1xf32>
    %198 = vector.broadcast %188 : vector<8x1xf32> to vector<8x32xf32>
    %199 = arith.subf %183, %198 : vector<8x32xf32>
    %cst_47 = arith.constant 9.99999974E-6 : f32
    %200 = vector.broadcast %cst_47 : f32 to vector<8x1xf32>
    %201 = arith.addf %197, %200 : vector<8x1xf32>
    %202 = math.rsqrt %201 : vector<8x1xf32>
    %203 = vector.broadcast %202 : vector<8x1xf32> to vector<8x32xf32>
    %204 = arith.mulf %199, %203 : vector<8x32xf32>
    %c2 = arith.constant 2 : index
    %c0_48 = arith.constant 0 : index
    %205 = vector.load %arg7[%c2, %c0_48] : memref<5x38xf32, #tpu.memory_space<vmem>>, vector<1x32xf32>
    %206 = vector.broadcast %205 : vector<1x32xf32> to vector<8x32xf32>
    %207 = arith.mulf %204, %206 : vector<8x32xf32>
    %c3 = arith.constant 3 : index
    %c0_49 = arith.constant 0 : index
    %208 = vector.load %arg7[%c3, %c0_49] : memref<5x38xf32, #tpu.memory_space<vmem>>, vector<1x32xf32>
    %209 = vector.broadcast %208 : vector<1x32xf32> to vector<8x32xf32>
    %210 = arith.addf %207, %209 : vector<8x32xf32>
    %cst_50 = arith.constant 5.000000e-01 : f32
    %211 = vector.broadcast %cst_50 : f32 to vector<8x32xf32>
    %212 = arith.mulf %211, %210 : vector<8x32xf32>
    %cst_51 = arith.constant 0.707106769 : f32
    %213 = vector.broadcast %cst_51 : f32 to vector<8x32xf32>
    %214 = arith.mulf %210, %213 : vector<8x32xf32>
    %215 = math.erf %214 : vector<8x32xf32>
    %cst_52 = arith.constant 1.000000e+00 : f32
    %216 = vector.broadcast %cst_52 : f32 to vector<8x32xf32>
    %217 = arith.addf %216, %215 : vector<8x32xf32>
    %218 = arith.mulf %212, %217 : vector<8x32xf32>
    %c0_53 = arith.constant 0 : index
    %c0_54 = arith.constant 0 : index
    %219 = vector.load %arg6[%c0_53, %c0_54] : memref<32x6xf32, #tpu.memory_space<vmem>>, vector<32x6xf32>
    %cst_55 = arith.constant dense<0.000000e+00> : vector<8x6xf32>
    %220 = tpu.matmul %218, %219, %cst_55 {dimension_numbers = #tpu.dot_dimension_numbers<[1], [0], [0], [1], [0, 0, 1, 1], [], []>} : vector<8x32xf32>, vector<32x6xf32>, vector<8x6xf32> -> vector<8x6xf32>
    %c4 = arith.constant 4 : index
    %c0_56 = arith.constant 0 : index
    %221 = vector.load %arg7[%c4, %c0_56] : memref<5x38xf32, #tpu.memory_space<vmem>>, vector<1x6xf32>
    %222 = vector.broadcast %221 : vector<1x6xf32> to vector<8x6xf32>
    %223 = arith.addf %220, %222 : vector<8x6xf32>
    %224 = tpu.iota {dimensions = array<i32: 0>} : vector<8x1xi32>
    %225 = vector.broadcast %0 : i32 to vector<8x1xi32>
    %226 = arith.addi %225, %224 : vector<8x1xi32>
    %c5_i32 = arith.constant 5 : i32
    %227 = vector.broadcast %c5_i32 : i32 to vector<8x1xi32>
    %228 = arith.addi %226, %227 : vector<8x1xi32>
    %c7_i32 = arith.constant 7 : i32
    %229 = vector.broadcast %c7_i32 : i32 to vector<8x1xi32>
    %230 = arith.minsi %229, %228 : vector<8x1xi32>
    %c5_i32_57 = arith.constant 5 : i32
    %231 = vector.broadcast %c5_i32_57 : i32 to vector<8x1xi32>
    %232 = arith.subi %226, %231 : vector<8x1xi32>
    %c0_i32_58 = arith.constant 0 : i32
    %233 = vector.broadcast %c0_i32_58 : i32 to vector<8x1xi32>
    %234 = arith.maxsi %233, %232 : vector<8x1xi32>
    %235 = arith.subi %230, %234 : vector<8x1xi32>
    %c1_i32 = arith.constant 1 : i32
    %236 = vector.broadcast %c1_i32 : i32 to vector<8x1xi32>
    %237 = arith.addi %235, %236 : vector<8x1xi32>
    %cst_59 = arith.constant 5.000000e-01 : f32
    %238 = vector.broadcast %cst_59 : f32 to vector<8x6xf32>
    %239 = arith.mulf %238, %184 : vector<8x6xf32>
    %cst_60 = arith.constant 5.000000e-01 : f32
    %240 = vector.broadcast %cst_60 : f32 to vector<8x6xf32>
    %241 = arith.mulf %240, %223 : vector<8x6xf32>
    %242 = arith.addf %239, %241 : vector<8x6xf32>
    %c1_i32_61 = arith.constant 1 : i32
    %243 = vector.broadcast %c1_i32_61 : i32 to vector<8x1xi32>
    %244 = arith.cmpi sgt, %237, %243 : vector<8x1xi32>
    %245 = vector.shape_cast %244 : vector<8x1xi1> to vector<8x1xi1>
    %246 = vector.broadcast %245 : vector<8x1xi1> to vector<8x6xi1>
    %247 = arith.select %246, %242, %184 : vector<8x6xi1>, vector<8x6xf32>
    %c0_62 = arith.constant 0 : index
    %c0_63 = arith.constant 0 : index
    %c0_64 = arith.constant 0 : index
    %248 = vector.load %arg8[%c0_62, %c0_63, %c0_64] : memref<1x8x6xf32, #tpu.memory_space<vmem>>, vector<1x8x6xf32>
    %249 = vector.shape_cast %248 : vector<1x8x6xf32> to vector<8x6xf32>
    %250 = vector.shape_cast %247 : vector<8x6xf32> to vector<1x8x6xf32>
    tpu.vector_store %arg8[%c0_62, %c0_63, %c0_64], %250 {strides = array<i32>} : memref<1x8x6xf32, #tpu.memory_space<vmem>>, vector<1x8x6xf32>,
    return
  }
  func.func @transform_0(%arg0: i32, %arg1: i32) -> (i32, i32, i32) {
    %c0_i32 = arith.constant 0 : i32
    %c0_i32_0 = arith.constant 0 : i32
    return %arg0, %arg1, %c0_i32 : i32, i32, i32
  }
  func.func @transform_1(%arg0: i32, %arg1: i32) -> (i32, i32, i32) {
    %c1_i32 = arith.constant 1 : i32
    %0 = arith.muli %arg1, %c1_i32 : i32
    %c1_i32_0 = arith.constant 1 : i32
    %1 = arith.subi %0, %c1_i32_0 : i32
    %c0_i32 = arith.constant 0 : i32
    %2 = arith.maxsi %1, %c0_i32 : i32
    %c0_i32_1 = arith.constant 0 : i32
    %c0_i32_2 = arith.constant 0 : i32
    return %arg0, %2, %c0_i32_1 : i32, i32, i32
  }
  func.func @transform_2(%arg0: i32, %arg1: i32) -> (i32, i32, i32) {
    %c1_i32 = arith.constant 1 : i32
    %0 = arith.addi %arg1, %c1_i32 : i32
    %c1_i32_0 = arith.constant 1 : i32
    %1 = arith.muli %0, %c1_i32_0 : i32
    %c0_i32 = arith.constant 0 : i32
    %2 = arith.minsi %1, %c0_i32 : i32
    %c0_i32_1 = arith.constant 0 : i32
    %c0_i32_2 = arith.constant 0 : i32
    return %arg0, %2, %c0_i32_1 : i32, i32, i32
  }
  func.func @transform_3(%arg0: i32, %arg1: i32) -> (i32, i32) {
    %c0_i32 = arith.constant 0 : i32
    %c0_i32_0 = arith.constant 0 : i32
    %c0_i32_1 = arith.constant 0 : i32
    return %c0_i32, %c0_i32_0 : i32, i32
  }
  func.func @transform_4(%arg0: i32, %arg1: i32) -> (i32, i32) {
    %c0_i32 = arith.constant 0 : i32
    %c0_i32_0 = arith.constant 0 : i32
    %c0_i32_1 = arith.constant 0 : i32
    return %c0_i32, %c0_i32_0 : i32, i32
  }
  func.func @transform_5(%arg0: i32, %arg1: i32) -> (i32, i32) {
    %c0_i32 = arith.constant 0 : i32
    %c0_i32_0 = arith.constant 0 : i32
    %c0_i32_1 = arith.constant 0 : i32
    return %c0_i32, %c0_i32_0 : i32, i32
  }
  func.func @transform_6(%arg0: i32, %arg1: i32) -> (i32, i32, i32) {
    %c0_i32 = arith.constant 0 : i32
    %c0_i32_0 = arith.constant 0 : i32
    return %arg0, %arg1, %c0_i32 : i32, i32, i32
  }
}

</mosaic_0001>

<llo_original>
// kernel: context_aware_span_classifier.1
$region0: #{context_aware_span_classifier.1}
  #allocation0 [shape = 'u32[]', space=smem, size = 0x4, offset = 0x4, fixed_abs, tag = 'smem constant byte address 0x4 - core index']
  #allocation1 [shape = 'u32[144,128]{1,0:T(1,128)}', space=vmem, size = 0x12000, scoped, tag = 'internal scratch']
  %s0 = inlined_call_operand.vmem [shape: f32[2,8,32], index: 0, kind: input, shape index: {}, may-alias: {0,1,2}]
  %s1 = inlined_call_operand.vmem [shape: f32[2,8,32], index: 1, kind: input, shape index: {}, may-alias: {0,1,2}]
  %s2 = inlined_call_operand.vmem [shape: f32[2,8,32], index: 2, kind: input, shape index: {}, may-alias: {0,1,2}]
  %s3 = inlined_call_operand.vmem [shape: f32[64,38], index: 3, kind: input, shape index: {}]
  %s4 = inlined_call_operand.vmem [shape: f32[32,6], index: 4, kind: input, shape index: {}]
  %s5 = inlined_call_operand.vmem [shape: f32[5,38], index: 5, kind: input, shape index: {}]
  %s6 = inlined_call_operand.vmem [shape: f32[2,8,6], index: 6, kind: output, shape index: {}]
  %s7 = sld [smem:[#allocation0]]
  $region57: #{context_aware_span_classifier.1} parent=0
    _
  %s9 = ssub.s32 1, %s7
  %s10 = scalar_select 0, %s9, %s7
  loop: start=0, step=1, limit=4
  $region2: #{context_aware_span_classifier.1} parent=0 // loop_pre_header
    _
  $region3: #{context_aware_span_classifier.1} parent=0 // loop_header
    %s12 = sphi 0, %s16
    %p13 = scmp.ge.s32.totalorder %s12, 4
    %s19 = sphi 0, %s31
    %s20 = sphi 0, %s27
    %s21 = sphi 0, %s19
    %s22 = sphi 0, %s20
    %s23 = sphi 0, %s21
    %s24 = sphi 0, %s22
    %s36 = sphi 0, %s38
    %s39 = sphi 0, %s36
    %s40 = sphi 0, %s39
    %s56 = sphi 0, %s40
    %s70 = sphi 0, %s72
    %s73 = sphi 0, %s70
    %s74 = sphi 0, %s73
    %s90 = sphi 0, %s74
    %s104 = sphi 0, %s106
    %s107 = sphi 0, %s104
    %s108 = sphi 0, %s107
    %s124 = sphi 0, %s108
    %s128 = sphi 0, %s128
    %s130 = sphi 0, %s128
    %s131 = sphi 0, %s130
    %s145 = sphi 0, %s131
    %s149 = sphi 0, %s149
    %s151 = sphi 0, %s149
    %s152 = sphi 0, %s151
    %s166 = sphi 0, %s152
    %s170 = sphi 0, %s170
    %s172 = sphi 0, %s170
    %s173 = sphi 0, %s172
    %s187 = sphi 0, %s173
    %s195 = sphi 0, %s197
    %s198 = sphi 0, %s195
    %s199 = sphi 0, %s198
    %s215 = sphi 0, %s199
  $region4: #{context_aware_span_classifier.1} parent=0 // loop_header_branch
    %15 = sbr.rel (%p13) target = $region8
  $region5: #{context_aware_span_classifier.1} parent=0 // loop_body
    %s17 = ssub.s32 %s12, 1
    %s18 = ssub.s32 %s12, 2
    %s25 = sadd.s32 1, %s20
    %p26 = scmp.ge.s32.totalorder %s25, 1
    %s27 = scalar_select %p26, 0, %s25
    %s28 = sadd.s32 1, %s19
    %s29 = scalar_select %p26, %s28, %s19
    %p30 = scmp.ge.s32.totalorder %s29, 2
    %s31 = scalar_select %p30, 0, %s29
    %s32 = ssub.s32 %s19, %s31
    %s33 = ssub.s32 %s20, %s27
    %s34 = sor.u32 %s32, %s33
    %p35 = scmp.eq.s32.totalorder %s34, 0
    %s37 = sadd.s32 %s36, 1
    %s38 = scalar_select %p35, %s36, %s37
    %p41 = pneg %p35
    %p42 = scmp.eq.s32.totalorder %s12, 1
    %p43 = por %p41, %p42
    %p44 = scmp.ne.s32.totalorder %s36, %s39
    %p45 = scmp.eq.s32.totalorder %s12, 0
    %p46 = por %p44, %p45
    %p47 = scmp.ne.s32.totalorder %s36, %s39
    %p48 = scmp.eq.s32.totalorder %s17, 1
    %p49 = por %p47, %p48
    %p50 = scmp.ne.s32.totalorder %s39, %s40
    %p51 = scmp.eq.s32.totalorder %s17, 0
    %p52 = por %p50, %p51
    %p53 = scmp.ne.s32.totalorder %s39, %s40
    %p54 = scmp.eq.s32.totalorder %s18, 1
    %p55 = por %p53, %p54
    %p57 = scmp.ne.s32.totalorder %s40, %s56
    %p58 = scmp.eq.s32.totalorder %s18, 0
    %p59 = por %p57, %p58
    %s60 = ssub.s32 %s20, 1
    %p61 = scmp.gt.s32.totalorder %s60, 0
    %s62 = scalar_select %p61, %s60, 0
    %s63 = ssub.s32 %s27, 1
    %p64 = scmp.gt.s32.totalorder %s63, 0
    %s65 = scalar_select %p64, %s63, 0
    %s66 = ssub.s32 %s19, %s31
    %s67 = ssub.s32 %s62, %s65
    %s68 = sor.u32 %s66, %s67
    %p69 = scmp.eq.s32.totalorder %s68, 0
    %s71 = sadd.s32 %s70, 1
    %s72 = scalar_select %p69, %s70, %s71
    %p75 = pneg %p69
    %p76 = scmp.eq.s32.totalorder %s12, 1
    %p77 = por %p75, %p76
    %p78 = scmp.ne.s32.totalorder %s70, %s73
    %p79 = scmp.eq.s32.totalorder %s12, 0
    %p80 = por %p78, %p79
    %p81 = scmp.ne.s32.totalorder %s70, %s73
    %p82 = scmp.eq.s32.totalorder %s17, 1
    %p83 = por %p81, %p82
    %p84 = scmp.ne.s32.totalorder %s73, %s74
    %p85 = scmp.eq.s32.totalorder %s17, 0
    %p86 = por %p84, %p85
    %p87 = scmp.ne.s32.totalorder %s73, %s74
    %p88 = scmp.eq.s32.totalorder %s18, 1
    %p89 = por %p87, %p88
    %p91 = scmp.ne.s32.totalorder %s74, %s90
    %p92 = scmp.eq.s32.totalorder %s18, 0
    %p93 = por %p91, %p92
    %s94 = sadd.s32 %s20, 1
    %p95 = scmp.lt.s32.totalorder %s94, 0
    %s96 = scalar_select %p95, %s94, 0
    %s97 = sadd.s32 %s27, 1
    %p98 = scmp.lt.s32.totalorder %s97, 0
    %s99 = scalar_select %p98, %s97, 0
    %s100 = ssub.s32 %s19, %s31
    %s101 = ssub.s32 %s96, %s99
    %s102 = sor.u32 %s100, %s101
    %p103 = scmp.eq.s32.totalorder %s102, 0
    %s105 = sadd.s32 %s104, 1
    %s106 = scalar_select %p103, %s104, %s105
    %p109 = pneg %p103
    %p110 = scmp.eq.s32.totalorder %s12, 1
    %p111 = por %p109, %p110
    %p112 = scmp.ne.s32.totalorder %s104, %s107
    %p113 = scmp.eq.s32.totalorder %s12, 0
    %p114 = por %p112, %p113
    %p115 = scmp.ne.s32.totalorder %s104, %s107
    %p116 = scmp.eq.s32.totalorder %s17, 1
    %p117 = por %p115, %p116
    %p118 = scmp.ne.s32.totalorder %s107, %s108
    %p119 = scmp.eq.s32.totalorder %s17, 0
    %p120 = por %p118, %p119
    %p121 = scmp.ne.s32.totalorder %s107, %s108
    %p122 = scmp.eq.s32.totalorder %s18, 1
    %p123 = por %p121, %p122
    %p125 = scmp.ne.s32.totalorder %s108, %s124
    %p126 = scmp.eq.s32.totalorder %s18, 0
    %p127 = por %p125, %p126
    %s129 = sadd.s32 %s128, 1
    %p132 = scmp.eq.s32.totalorder %s12, 1
    %p133 = scmp.ne.s32.totalorder %s128, %s130
    %p134 = scmp.eq.s32.totalorder %s12, 0
    %p135 = por %p133, %p134
    %p136 = scmp.ne.s32.totalorder %s128, %s130
    %p137 = scmp.eq.s32.totalorder %s17, 1
    %p138 = por %p136, %p137
    %p139 = scmp.ne.s32.totalorder %s130, %s131
    %p140 = scmp.eq.s32.totalorder %s17, 0
    %p141 = por %p139, %p140
    %p142 = scmp.ne.s32.totalorder %s130, %s131
    %p143 = scmp.eq.s32.totalorder %s18, 1
    %p144 = por %p142, %p143
    %p146 = scmp.ne.s32.totalorder %s131, %s145
    %p147 = scmp.eq.s32.totalorder %s18, 0
    %p148 = por %p146, %p147
    %s150 = sadd.s32 %s149, 1
    %p153 = scmp.eq.s32.totalorder %s12, 1
    %p154 = scmp.ne.s32.totalorder %s149, %s151
    %p155 = scmp.eq.s32.totalorder %s12, 0
    %p156 = por %p154, %p155
    %p157 = scmp.ne.s32.totalorder %s149, %s151
    %p158 = scmp.eq.s32.totalorder %s17, 1
    %p159 = por %p157, %p158
    %p160 = scmp.ne.s32.totalorder %s151, %s152
    %p161 = scmp.eq.s32.totalorder %s17, 0
    %p162 = por %p160, %p161
    %p163 = scmp.ne.s32.totalorder %s151, %s152
    %p164 = scmp.eq.s32.totalorder %s18, 1
    %p165 = por %p163, %p164
    %p167 = scmp.ne.s32.totalorder %s152, %s166
    %p168 = scmp.eq.s32.totalorder %s18, 0
    %p169 = por %p167, %p168
    %s171 = sadd.s32 %s170, 1
    %p174 = scmp.eq.s32.totalorder %s12, 1
    %p175 = scmp.ne.s32.totalorder %s170, %s172
    %p176 = scmp.eq.s32.totalorder %s12, 0
    %p177 = por %p175, %p176
    %p178 = scmp.ne.s32.totalorder %s170, %s172
    %p179 = scmp.eq.s32.totalorder %s17, 1
    %p180 = por %p178, %p179
    %p181 = scmp.ne.s32.totalorder %s172, %s173
    %p182 = scmp.eq.s32.totalorder %s17, 0
    %p183 = por %p181, %p182
    %p184 = scmp.ne.s32.totalorder %s172, %s173
    %p185 = scmp.eq.s32.totalorder %s18, 1
    %p186 = por %p184, %p185
    %p188 = scmp.ne.s32.totalorder %s173, %s187
    %p189 = scmp.eq.s32.totalorder %s18, 0
    %p190 = por %p188, %p189
    %s191 = ssub.s32 %s19, %s31
    %s192 = ssub.s32 %s20, %s27
    %s193 = sor.u32 %s191, %s192
    %p194 = scmp.eq.s32.totalorder %s193, 0
    %s196 = sadd.s32 %s195, 1
    %s197 = scalar_select %p194, %s195, %s196
    %p200 = pneg %p194
    %p201 = scmp.eq.s32.totalorder %s12, 1
    %p202 = por %p200, %p201
    %p203 = scmp.ne.s32.totalorder %s195, %s198
    %p204 = scmp.eq.s32.totalorder %s12, 0
    %p205 = por %p203, %p204
    %p206 = scmp.ne.s32.totalorder %s195, %s198
    %p207 = scmp.eq.s32.totalorder %s17, 1
    %p208 = por %p206, %p207
    %p209 = scmp.ne.s32.totalorder %s198, %s199
    %p210 = scmp.eq.s32.totalorder %s17, 0
    %p211 = por %p209, %p210
    %p212 = scmp.ne.s32.totalorder %s198, %s199
    %p213 = scmp.eq.s32.totalorder %s18, 1
    %p214 = por %p212, %p213
    %p216 = scmp.ne.s32.totalorder %s199, %s215
    %p217 = scmp.eq.s32.totalorder %s18, 0
    %p218 = por %p216, %p217
    %p219 = scmp.le.s32.totalorder 1, %s12
    %p220 = scmp.lt.s32.totalorder %s12, 3
    %p221 = pnand %p219, %p220
    %p222 = pneg %p221
    // Predicated region
    $region9: #{context_aware_span_classifier.1} parent=5 // pred_check
      _
    $region10: #{context_aware_span_classifier.1} parent=5 // pred_check_branch
      %224 = sbr.rel (%p221) target = $region12
    $region11: #{context_aware_span_classifier.1} parent=5 // pred_region
      %s225 = ssub.s32 %s12, 1
      // Predicated region
      $region13: #{context_aware_span_classifier.1} parent=11 // pred_check
        %p226 = pneg %p141
      $region14: #{context_aware_span_classifier.1} parent=11 // pred_check_branch
        %228 = sbr.rel (%p226) target = $region16
      $region15: #{context_aware_span_classifier.1} parent=11 // pred_region
        _
      $region16: #{context_aware_span_classifier.1} parent=11 // pred_fallthru
        _
      // Predicated region
      $region17: #{context_aware_span_classifier.1} parent=11 // pred_check
        %p229 = pneg %p162
      $region18: #{context_aware_span_classifier.1} parent=11 // pred_check_branch
        %231 = sbr.rel (%p229) target = $region20
      $region19: #{context_aware_span_classifier.1} parent=11 // pred_region
        _
      $region20: #{context_aware_span_classifier.1} parent=11 // pred_fallthru
        _
      // Predicated region
      $region21: #{context_aware_span_classifier.1} parent=11 // pred_check
        %p232 = pneg %p183
      $region22: #{context_aware_span_classifier.1} parent=11 // pred_check_branch
        %234 = sbr.rel (%p232) target = $region24
      $region23: #{context_aware_span_classifier.1} parent=11 // pred_region
        _
      $region24: #{context_aware_span_classifier.1} parent=11 // pred_fallthru
        _
    $region12: #{context_aware_span_classifier.1} parent=5 // pred_fallthru
      _
    %p235 = scmp.lt.s32.totalorder %s12, 2
    // Predicated region
    $region25: #{context_aware_span_classifier.1} parent=5 // pred_check
      %p236 = pneg %p235
    $region26: #{context_aware_span_classifier.1} parent=5 // pred_check_branch
      %238 = sbr.rel (%p236) target = $region28
    $region27: #{context_aware_span_classifier.1} parent=5 // pred_region
      // Predicated region
      $region29: #{context_aware_span_classifier.1} parent=27 // pred_check
        %p239 = pneg %p46
      $region30: #{context_aware_span_classifier.1} parent=27 // pred_check_branch
        %241 = sbr.rel (%p239) target = $region32
      $region31: #{context_aware_span_classifier.1} parent=27 // pred_region
        %p242 = scmp.lt.s32.totalorder %s19, 1
        %s243 = scalar_select %p242, %s19, 1
        %p244 = scmp.lt.s32.totalorder %s20, 0
        %s245 = scalar_select %p244, %s20, 0
        %s246 = sadd.s32 %s245, %s243
        %s247 = smul.addr %s246, 8
        %s248 = scalar_lea.vmem %s0, %s247
      $region32: #{context_aware_span_classifier.1} parent=27 // pred_fallthru
        _
      // Predicated region
      $region33: #{context_aware_span_classifier.1} parent=27 // pred_check
        %p249 = pneg %p80
      $region34: #{context_aware_span_classifier.1} parent=27 // pred_check_branch
        %251 = sbr.rel (%p249) target = $region36
      $region35: #{context_aware_span_classifier.1} parent=27 // pred_region
        %s252 = ssub.s32 %s20, 1
        %p253 = scmp.gt.s32.totalorder %s252, 0
        %s254 = scalar_select %p253, %s252, 0
        %p255 = scmp.lt.s32.totalorder %s19, 1
        %s256 = scalar_select %p255, %s19, 1
        %p257 = scmp.lt.s32.totalorder %s254, 0
        %s258 = scalar_select %p257, %s254, 0
        %s259 = sadd.s32 %s258, %s256
        %s260 = smul.addr %s259, 8
        %s261 = scalar_lea.vmem %s1, %s260
        %s262 = ssub.s32 %s20, 1
        %p263 = scmp.gt.s32.totalorder %s262, 0
        %s264 = scalar_select %p263, %s262, 0
      $region36: #{context_aware_span_classifier.1} parent=27 // pred_fallthru
        _
      // Predicated region
      $region37: #{context_aware_span_classifier.1} parent=27 // pred_check
        %p265 = pneg %p114
      $region38: #{context_aware_span_classifier.1} parent=27 // pred_check_branch
        %267 = sbr.rel (%p265) target = $region40
      $region39: #{context_aware_span_classifier.1} parent=27 // pred_region
        %s268 = sadd.s32 %s20, 1
        %p269 = scmp.lt.s32.totalorder %s268, 0
        %s270 = scalar_select %p269, %s268, 0
        %p271 = scmp.lt.s32.totalorder %s19, 1
        %s272 = scalar_select %p271, %s19, 1
        %p273 = scmp.lt.s32.totalorder %s270, 0
        %s274 = scalar_select %p273, %s270, 0
        %s275 = sadd.s32 %s274, %s272
        %s276 = smul.addr %s275, 8
        %s277 = scalar_lea.vmem %s2, %s276
        %s278 = sadd.s32 %s20, 1
        %p279 = scmp.lt.s32.totalorder %s278, 0
        %s280 = scalar_select %p279, %s278, 0
      $region40: #{context_aware_span_classifier.1} parent=27 // pred_fallthru
        _
    $region28: #{context_aware_span_classifier.1} parent=5 // pred_fallthru
      _
    %p281 = scmp.le.s32.totalorder 1, %s12
    %p282 = scmp.lt.s32.totalorder %s12, 3
    %p283 = pnand %p281, %p282
    %p284 = pneg %p283
    // Predicated region
    $region41: #{context_aware_span_classifier.1} parent=5 // pred_check
      _
    $region42: #{context_aware_span_classifier.1} parent=5 // pred_check_branch
      %286 = sbr.rel (%p283) target = $region44
    $region43: #{context_aware_span_classifier.1} parent=5 // pred_region
      %s287 = ssub.s32 %s12, 1
      %p288 = scmp.lt.s32.totalorder %s21, 1
      %s289 = scalar_select %p288, %s21, 1
      %p290 = scmp.lt.s32.totalorder %s22, 0
      %s291 = scalar_select %p290, %s22, 0
      %s292 = sadd.s32 %s291, %s289
      %s293 = smul.addr %s292, 8
      %s294 = scalar_lea.vmem %s0, %s293
      %p295 = pneg %p52
      %p296 = pneg %p49
      %s297 = ssub.s32 %s22, 1
      %p298 = scmp.gt.s32.totalorder %s297, 0
      %s299 = scalar_select %p298, %s297, 0
      %p300 = scmp.lt.s32.totalorder %s21, 1
      %s301 = scalar_select %p300, %s21, 1
      %p302 = scmp.lt.s32.totalorder %s299, 0
      %s303 = scalar_select %p302, %s299, 0
      %s304 = sadd.s32 %s303, %s301
      %s305 = smul.addr %s304, 8
      %s306 = scalar_lea.vmem %s1, %s305
      %p307 = pneg %p86
      %p308 = pneg %p83
      %s309 = sadd.s32 %s22, 1
      %p310 = scmp.lt.s32.totalorder %s309, 0
      %s311 = scalar_select %p310, %s309, 0
      %p312 = scmp.lt.s32.totalorder %s21, 1
      %s313 = scalar_select %p312, %s21, 1
      %p314 = scmp.lt.s32.totalorder %s311, 0
      %s315 = scalar_select %p314, %s311, 0
      %s316 = sadd.s32 %s315, %s313
      %s317 = smul.addr %s316, 8
      %s318 = scalar_lea.vmem %s2, %s317
      %p319 = pneg %p120
      %p320 = pneg %p117
      %p321 = pneg %p141
      %p322 = pneg %p138
      %p323 = pneg %p162
      %p324 = pneg %p159
      %p325 = pneg %p183
      %p326 = pneg %p180
      %p327 = pneg %p211
      %p328 = pneg %p208
      %p329 = scmp.lt.s32.totalorder %s21, 1
      %s330 = scalar_select %p329, %s21, 1
      %p331 = scmp.lt.s32.totalorder %s22, 0
      %s332 = scalar_select %p331, %s22, 0
      %s333 = sadd.s32 %s332, %s330
      %s334 = smul.addr %s333, 8
      %s335 = scalar_lea.vmem %s6, %s334
      %p336 = scmp.lt.s32.totalorder %s21, 1
      %s337 = scalar_select %p336, %s21, 1
      %p338 = scmp.lt.s32.totalorder %s22, 0
      %s339 = scalar_select %p338, %s22, 0
      %s340 = sadd.s32 %s339, %s337
      %s341 = smul.addr %s340, 8
      %s342 = scalar_lea.vmem %s0, %s341
      %s343 = ssub.s32 %s22, 1
      %p344 = scmp.gt.s32.totalorder %s343, 0
      %s345 = scalar_select %p344, %s343, 0
      %p346 = scmp.lt.s32.totalorder %s21, 1
      %s347 = scalar_select %p346, %s21, 1
      %p348 = scmp.lt.s32.totalorder %s345, 0
      %s349 = scalar_select %p348, %s345, 0
      %s350 = sadd.s32 %s349, %s347
      %s351 = smul.addr %s350, 8
      %s352 = scalar_lea.vmem %s1, %s351
      %s353 = ssub.s32 %s22, 1
      %p354 = scmp.gt.s32.totalorder %s353, 0
      %s355 = scalar_select %p354, %s353, 0
      %s356 = sadd.s32 %s22, 1
      %p357 = scmp.lt.s32.totalorder %s356, 0
      %s358 = scalar_select %p357, %s356, 0
      %p359 = scmp.lt.s32.totalorder %s21, 1
      %s360 = scalar_select %p359, %s21, 1
      %p361 = scmp.lt.s32.totalorder %s358, 0
      %s362 = scalar_select %p361, %s358, 0
      %s363 = sadd.s32 %s362, %s360
      %s364 = smul.addr %s363, 8
      %s365 = scalar_lea.vmem %s2, %s364
      %s366 = sadd.s32 %s22, 1
      %p367 = scmp.lt.s32.totalorder %s366, 0
      %s368 = scalar_select %p367, %s366, 0
      %p369 = scmp.lt.s32.totalorder %s21, 1
      %s370 = scalar_select %p369, %s21, 1
      %p371 = scmp.lt.s32.totalorder %s22, 0
      %s372 = scalar_select %p371, %s22, 0
      %s373 = sadd.s32 %s372, %s370
      %s374 = smul.addr %s373, 8
      %s375 = scalar_lea.vmem %s6, %s374
      %s376 = smul.u32 %s22, 8
      %v377 = vld [vmem:[%s352] sm:$0xff]
      %v378 = vld [vmem:[%s342] sm:$0xff]
      %v379 = vld [vmem:[%s365] sm:$0xff]
      %v380 = vlaneseq
      %v381 = vshrl.u32 %v380, 7
      %v382 = vadd.s32 %v381, 8
      %v383 = vadd.s32 %v381, 16
      %s384 = ssub.s32 %s376, 8
      %v385 = vstv %s384
      %v386 = vadd.s32 %v385, %v381
      %v387 = vadd.s32 %v385, %v382
      %v388 = vadd.s32 %v385, %v383
      %vm389 = vcmp.ge.s32.totalorder %v386, 0
      %vm390 = vcmp.ge.s32.totalorder %v387, 0
      %vm391 = vcmp.ge.s32.totalorder %v388, 0
      %vm392 = vcmp.lt.s32.totalorder %v386, 8
      %vm393 = vcmp.lt.s32.totalorder %v387, 8
      %vm394 = vcmp.lt.s32.totalorder %v388, 8
      %vm395 = vmand %vm389, %vm392
      %vm396 = vmand %vm390, %vm393
      %vm397 = vmand %vm391, %vm394
      %v398 = vsel %vm395, 1, 0
      %v399 = vsel %vm396, 1, 0
      %v400 = vsel %vm397, 1, 0
      %vm401 = vcmp.eq.s32.totalorder %v398, 1
      %vm402 = vcmp.eq.s32.totalorder %v399, 1
      %vm403 = vcmp.eq.s32.totalorder %v400, 1
      %v404 = vsel %vm401, %v377, 0.0
      %v405 = vsel %vm402, %v378, 0.0
      %v406 = vsel %vm403, %v379, 0.0
      %v407 = vld [vmem:[%s5 + $0x1] sm:$0x1]
      %v408 = vlaneseq
      %v409 = vshrl.u32 %v408, 7
      %v410 = vsub.s32 0, %v409
      %v411 = vrot.slane %v407, %v410
      %v412 = vmul.f32 %v404, %v411
      %v413 = vmul.f32 %v405, %v411
      %v414 = vmul.f32 %v406, %v411
      %vm415 = vcmask 261120
      %v416 = vsel %vm415, %v412, 0.0
      %417 = vadd.xlane.f32.xlu0 %v416
      %v418 = vpop.xlane.xlu0 %417
      %v419 = vsel %vm415, %v413, 0.0
      %420 = vadd.xlane.f32.xlu0 %v419
      %v421 = vpop.xlane.xlu0 %420
      %v422 = vsel %vm415, %v414, 0.0
      %423 = vadd.xlane.f32.xlu0 %v422
      %v424 = vpop.xlane.xlu0 %423
      %v425 = vsel %vm395, %v418, -1e+30
      %v426 = vsel %vm396, %v421, -1e+30
      %v427 = vsel %vm397, %v424, -1e+30
      %vm430 = vcmask 1046528
      %v431 = vrot.slane %v425, 1
      %v432 = vrot.slane %v426, 1
      %v433 = vsel %vm430, %v431, %v432
      %v436 = vmax.f32 %v425, %v433
      %v437 = vmax.f32 %v426, %v432
      %vm438 = vcmask 1045504
      %v439 = vrot.slane %v425, 2
      %v440 = vrot.slane %v426, 2
      %v441 = vsel %vm438, %v439, %v440
      %v444 = vmax.f32 %v436, %v441
      %v445 = vmax.f32 %v437, %v440
      %vm446 = vcmask 1044480
      %v447 = vrot.slane %v425, 3
      %v448 = vrot.slane %v426, 3
      %v449 = vsel %vm446, %v447, %v448
      %v452 = vmax.f32 %v444, %v449
      %v453 = vmax.f32 %v445, %v448
      %vm454 = vcmask 1043456
      %v455 = vrot.slane %v425, 4
      %v456 = vrot.slane %v426, 4
      %v457 = vsel %vm454, %v455, %v456
      %v460 = vmax.f32 %v452, %v457
      %v461 = vmax.f32 %v453, %v456
      %v462 = vrot.slane %v426, 5
      %v464 = vmax.f32 %v460, %v462
      %v465 = vmax.f32 %v461, %v462
      %vm467 = vcmask 1041408
      %v468 = vrot.slane %v426, 6
      %v469 = vrot.slane %v427, 6
      %v470 = vsel %vm467, %v468, %v469
      %v473 = vmax.f32 %v464, %v468
      %v474 = vmax.f32 %v465, %v470
      %vm475 = vcmask 1040384
      %v476 = vrot.slane %v426, 7
      %v477 = vrot.slane %v427, 7
      %v478 = vsel %vm475, %v476, %v477
      %v481 = vmax.f32 %v473, %v476
      %v482 = vmax.f32 %v474, %v478
      %v483 = vmax.f32 %v481, %v426
      %v484 = vmax.f32 %v482, %v427
      %v485 = vrot.slane %v427, 1
      %v486 = vsel %vm430, %v432, %v485
      %v489 = vmax.f32 %v483, %v486
      %v490 = vmax.f32 %v484, %v485
      %v491 = vrot.slane %v427, 2
      %v492 = vsel %vm438, %v440, %v491
      %v495 = vmax.f32 %v489, %v492
      %v496 = vmax.f32 %v490, %v491
      %vm497 = vcmp.gt.f32.partialorder %v425, -1e+29
      %vm498 = vcmp.gt.f32.partialorder %v426, -1e+29
      %v499 = vsub.f32 %v425, %v495
      %v500 = vsub.f32 %v426, %v496
      %v501 = vmul.f32 %v499, 1.442695
      %v502 = vpow.pop %v501
      %v503 = vmul.f32 %v500, 1.442695
      %v504 = vpow.pop %v503
      %v505 = vsel %vm497, %v502, 0.0
      %v506 = vsel %vm498, %v504, 0.0
      %v507 = vadd.f32 %v505, 0.0
      %v508 = vadd.f32 %v506, 0.0
      %510 = vset.pattern.permute.xlu0 0
      %511 = vperm.xlu0 %510, %v505
      %v512 = vpop.permute.xlu0 %511
      %515 = vset.pattern.permute.xlu0 0
      %516 = vperm.xlu0 %515, %v506
      %v517 = vpop.permute.xlu0 %516
      %v519 = vmul.f32 %v512, %v404
      %v520 = vmul.f32 %v517, %v405
      %v521 = vadd.f32 %v519, 0.0
      %v522 = vadd.f32 %v520, 0.0
      %v525 = vrot.slane %v495, 7
      %v526 = vrot.slane %v496, 7
      %v527 = vsel %vm475, %v525, %v526
      %v530 = vsub.f32 %v425, %v525
      %v531 = vsub.f32 %v426, %v527
      %v532 = vmul.f32 %v530, 1.442695
      %v533 = vpow.pop %v532
      %v534 = vmul.f32 %v531, 1.442695
      %v535 = vpow.pop %v534
      %v536 = vsel %vm497, %v533, 0.0
      %v537 = vsel %vm498, %v535, 0.0
      %v540 = vrot.slane %v536, 1
      %v541 = vrot.slane %v537, 1
      %v542 = vsel %vm430, %v540, %v541
      %v545 = vadd.f32 %v507, %v542
      %v546 = vadd.f32 %v508, %v541
      %547 = vset.pattern.permute.xlu0 0
      %548 = vperm.xlu0 %547, %v536
      %v549 = vpop.permute.xlu0 %548
      %551 = vset.pattern.permute.xlu0 0
      %552 = vperm.xlu0 %551, %v537
      %v553 = vpop.permute.xlu0 %552
      %v555 = vmul.f32 %v549, %v404
      %v556 = vmul.f32 %v553, %v405
      %v559 = vrot.slane %v555, 1
      %v560 = vrot.slane %v556, 1
      %v561 = vsel %vm430, %v559, %v560
      %v564 = vadd.f32 %v521, %v561
      %v565 = vadd.f32 %v522, %v560
      %v566 = vrot.slane %v495, 6
      %v567 = vrot.slane %v496, 6
      %v568 = vsel %vm467, %v566, %v567
      %v571 = vsub.f32 %v425, %v566
      %v572 = vsub.f32 %v426, %v568
      %v573 = vmul.f32 %v571, 1.442695
      %v574 = vpow.pop %v573
      %v575 = vmul.f32 %v572, 1.442695
      %v576 = vpow.pop %v575
      %v577 = vsel %vm497, %v574, 0.0
      %v578 = vsel %vm498, %v576, 0.0
      %v581 = vrot.slane %v577, 2
      %v582 = vrot.slane %v578, 2
      %v583 = vsel %vm438, %v581, %v582
      %v586 = vadd.f32 %v545, %v583
      %v587 = vadd.f32 %v546, %v582
      %588 = vset.pattern.permute.xlu0 0
      %589 = vperm.xlu0 %588, %v577
      %v590 = vpop.permute.xlu0 %589
      %592 = vset.pattern.permute.xlu0 0
      %593 = vperm.xlu0 %592, %v578
      %v594 = vpop.permute.xlu0 %593
      %v596 = vmul.f32 %v590, %v404
      %v597 = vmul.f32 %v594, %v405
      %v600 = vrot.slane %v596, 2
      %v601 = vrot.slane %v597, 2
      %v602 = vsel %vm438, %v600, %v601
      %v605 = vadd.f32 %v564, %v602
      %v606 = vadd.f32 %v565, %v601
      %vm607 = vcmask 1042432
      %v608 = vrot.slane %v495, 5
      %v609 = vrot.slane %v496, 5
      %v610 = vsel %vm607, %v608, %v609
      %v613 = vsub.f32 %v425, %v608
      %v614 = vsub.f32 %v426, %v610
      %v615 = vmul.f32 %v613, 1.442695
      %v616 = vpow.pop %v615
      %v617 = vmul.f32 %v614, 1.442695
      %v618 = vpow.pop %v617
      %v619 = vsel %vm497, %v616, 0.0
      %v620 = vsel %vm498, %v618, 0.0
      %v623 = vrot.slane %v619, 3
      %v624 = vrot.slane %v620, 3
      %v625 = vsel %vm446, %v623, %v624
      %v628 = vadd.f32 %v586, %v625
      %v629 = vadd.f32 %v587, %v624
      %630 = vset.pattern.permute.xlu0 0
      %631 = vperm.xlu0 %630, %v619
      %v632 = vpop.permute.xlu0 %631
      %634 = vset.pattern.permute.xlu0 0
      %635 = vperm.xlu0 %634, %v620
      %v636 = vpop.permute.xlu0 %635
      %v638 = vmul.f32 %v632, %v404
      %v639 = vmul.f32 %v636, %v405
      %v642 = vrot.slane %v638, 3
      %v643 = vrot.slane %v639, 3
      %v644 = vsel %vm446, %v642, %v643
      %v647 = vadd.f32 %v605, %v644
      %v648 = vadd.f32 %v606, %v643
      %v649 = vrot.slane %v495, 4
      %v650 = vrot.slane %v496, 4
      %v651 = vsel %vm454, %v649, %v650
      %v654 = vsub.f32 %v425, %v649
      %v655 = vsub.f32 %v426, %v651
      %v656 = vmul.f32 %v654, 1.442695
      %v657 = vpow.pop %v656
      %v658 = vmul.f32 %v655, 1.442695
      %v659 = vpow.pop %v658
      %v660 = vsel %vm497, %v657, 0.0
      %v661 = vsel %vm498, %v659, 0.0
      %v664 = vrot.slane %v660, 4
      %v665 = vrot.slane %v661, 4
      %v666 = vsel %vm454, %v664, %v665
      %v669 = vadd.f32 %v628, %v666
      %v670 = vadd.f32 %v629, %v665
      %671 = vset.pattern.permute.xlu0 0
      %672 = vperm.xlu0 %671, %v660
      %v673 = vpop.permute.xlu0 %672
      %675 = vset.pattern.permute.xlu0 0
      %676 = vperm.xlu0 %675, %v661
      %v677 = vpop.permute.xlu0 %676
      %v679 = vmul.f32 %v673, %v404
      %v680 = vmul.f32 %v677, %v405
      %v683 = vrot.slane %v679, 4
      %v684 = vrot.slane %v680, 4
      %v685 = vsel %vm454, %v683, %v684
      %v688 = vadd.f32 %v647, %v685
      %v689 = vadd.f32 %v648, %v684
      %v690 = vrot.slane %v495, 3
      %v691 = vrot.slane %v496, 3
      %v692 = vsel %vm446, %v690, %v691
      %v694 = vsub.f32 %v426, %v692
      %v695 = vmul.f32 %v694, 1.442695
      %v696 = vpow.pop %v695
      %v697 = vsel %vm498, %v696, 0.0
      %v699 = vrot.slane %v697, 5
      %v701 = vadd.f32 %v669, %v699
      %v702 = vadd.f32 %v670, %v699
      %703 = vset.pattern.permute.xlu0 0
      %704 = vperm.xlu0 %703, %v697
      %v705 = vpop.permute.xlu0 %704
      %v707 = vmul.f32 %v705, %v405
      %v709 = vrot.slane %v707, 5
      %v711 = vadd.f32 %v688, %v709
      %v712 = vadd.f32 %v689, %v709
      %vm713 = vcmp.gt.f32.partialorder %v427, -1e+29
      %v714 = vrot.slane %v495, 2
      %v715 = vrot.slane %v496, 2
      %v716 = vsel %vm438, %v714, %v715
      %v719 = vsub.f32 %v426, %v716
      %v720 = vsub.f32 %v427, %v715
      %v721 = vmul.f32 %v719, 1.442695
      %v722 = vpow.pop %v721
      %v723 = vmul.f32 %v720, 1.442695
      %v724 = vpow.pop %v723
      %v725 = vsel %vm498, %v722, 0.0
      %v726 = vsel %vm713, %v724, 0.0
      %v729 = vrot.slane %v725, 6
      %v730 = vrot.slane %v726, 6
      %v731 = vsel %vm467, %v729, %v730
      %v734 = vadd.f32 %v701, %v729
      %v735 = vadd.f32 %v702, %v731
      %736 = vset.pattern.permute.xlu0 0
      %737 = vperm.xlu0 %736, %v725
      %v738 = vpop.permute.xlu0 %737
      %740 = vset.pattern.permute.xlu0 0
      %741 = vperm.xlu0 %740, %v726
      %v742 = vpop.permute.xlu0 %741
      %v744 = vmul.f32 %v738, %v405
      %v745 = vmul.f32 %v742, %v406
      %v748 = vrot.slane %v744, 6
      %v749 = vrot.slane %v745, 6
      %v750 = vsel %vm467, %v748, %v749
      %v753 = vadd.f32 %v711, %v748
      %v754 = vadd.f32 %v712, %v750
      %v755 = vrot.slane %v495, 1
      %v756 = vrot.slane %v496, 1
      %v757 = vsel %vm430, %v755, %v756
      %v760 = vsub.f32 %v426, %v757
      %v761 = vsub.f32 %v427, %v756
      %v762 = vmul.f32 %v760, 1.442695
      %v763 = vpow.pop %v762
      %v764 = vmul.f32 %v761, 1.442695
      %v765 = vpow.pop %v764
      %v766 = vsel %vm498, %v763, 0.0
      %v767 = vsel %vm713, %v765, 0.0
      %v770 = vrot.slane %v766, 7
      %v771 = vrot.slane %v767, 7
      %v772 = vsel %vm475, %v770, %v771
      %v775 = vadd.f32 %v734, %v770
      %v776 = vadd.f32 %v735, %v772
      %777 = vset.pattern.permute.xlu0 0
      %778 = vperm.xlu0 %777, %v766
      %v779 = vpop.permute.xlu0 %778
      %781 = vset.pattern.permute.xlu0 0
      %782 = vperm.xlu0 %781, %v767
      %v783 = vpop.permute.xlu0 %782
      %v785 = vmul.f32 %v779, %v405
      %v786 = vmul.f32 %v783, %v406
      %v789 = vrot.slane %v785, 7
      %v790 = vrot.slane %v786, 7
      %v791 = vsel %vm475, %v789, %v790
      %v794 = vadd.f32 %v753, %v789
      %v795 = vadd.f32 %v754, %v791
      %v796 = vsub.f32 %v426, %v495
      %v797 = vsub.f32 %v427, %v496
      %v798 = vmul.f32 %v796, 1.442695
      %v799 = vpow.pop %v798
      %v800 = vmul.f32 %v797, 1.442695
      %v801 = vpow.pop %v800
      %v802 = vsel %vm498, %v799, 0.0
      %v803 = vsel %vm713, %v801, 0.0
      %v804 = vadd.f32 %v775, %v802
      %v805 = vadd.f32 %v776, %v803
      %807 = vset.pattern.permute.xlu0 0
      %808 = vperm.xlu0 %807, %v802
      %v809 = vpop.permute.xlu0 %808
      %812 = vset.pattern.permute.xlu0 0
      %813 = vperm.xlu0 %812, %v803
      %v814 = vpop.permute.xlu0 %813
      %v816 = vmul.f32 %v809, %v405
      %v817 = vmul.f32 %v814, %v406
      %v818 = vadd.f32 %v794, %v816
      %v819 = vadd.f32 %v795, %v817
      %v820 = vsub.f32 %v426, %v525
      %v821 = vsub.f32 %v427, %v527
      %v822 = vmul.f32 %v820, 1.442695
      %v823 = vpow.pop %v822
      %v824 = vmul.f32 %v821, 1.442695
      %v825 = vpow.pop %v824
      %v826 = vsel %vm498, %v823, 0.0
      %v827 = vsel %vm713, %v825, 0.0
      %v830 = vrot.slane %v826, 1
      %v831 = vrot.slane %v827, 1
      %v832 = vsel %vm430, %v830, %v831
      %v835 = vadd.f32 %v804, %v832
      %v836 = vadd.f32 %v805, %v831
      %837 = vset.pattern.permute.xlu0 0
      %838 = vperm.xlu0 %837, %v826
      %v839 = vpop.permute.xlu0 %838
      %841 = vset.pattern.permute.xlu0 0
      %842 = vperm.xlu0 %841, %v827
      %v843 = vpop.permute.xlu0 %842
      %v845 = vmul.f32 %v839, %v405
      %v846 = vmul.f32 %v843, %v406
      %v849 = vrot.slane %v845, 1
      %v850 = vrot.slane %v846, 1
      %v851 = vsel %vm430, %v849, %v850
      %v854 = vadd.f32 %v818, %v851
      %v855 = vadd.f32 %v819, %v850
      %v856 = vsub.f32 %v426, %v566
      %v857 = vsub.f32 %v427, %v568
      %v858 = vmul.f32 %v856, 1.442695
      %v859 = vpow.pop %v858
      %v860 = vmul.f32 %v857, 1.442695
      %v861 = vpow.pop %v860
      %v862 = vsel %vm498, %v859, 0.0
      %v863 = vsel %vm713, %v861, 0.0
      %v866 = vrot.slane %v862, 2
      %v867 = vrot.slane %v863, 2
      %v868 = vsel %vm438, %v866, %v867
      %v871 = vadd.f32 %v835, %v868
      %v872 = vadd.f32 %v836, %v867
      %873 = vset.pattern.permute.xlu0 0
      %874 = vperm.xlu0 %873, %v862
      %v875 = vpop.permute.xlu0 %874
      %877 = vset.pattern.permute.xlu0 0
      %878 = vperm.xlu0 %877, %v863
      %v879 = vpop.permute.xlu0 %878
      %v881 = vmul.f32 %v875, %v405
      %v882 = vmul.f32 %v879, %v406
      %v885 = vrot.slane %v881, 2
      %v886 = vrot.slane %v882, 2
      %v887 = vsel %vm438, %v885, %v886
      %v890 = vadd.f32 %v854, %v887
      %v891 = vadd.f32 %v855, %v886
      %v892 = vmax.f32 %v871, 1e-30
      %v893 = vmax.f32 %v872, 1e-30
      %895 = vset.pattern.permute.xlu0 0
      %896 = vperm.xlu0 %895, %v892
      %v897 = vpop.permute.xlu0 %896
      %900 = vset.pattern.permute.xlu0 0
      %901 = vperm.xlu0 %900, %v893
      %v902 = vpop.permute.xlu0 %901
      %v904 = vrcp.pop %v897
      %v905 = vmul.f32 %v890, %v904
      %v906 = vrcp.pop %v902
      %v907 = vmul.f32 %v891, %v906
      %v910 = vrot.slane %v905, 3
      %v911 = vrot.slane %v907, 3
      %v912 = vsel %vm446, %v910, %v911
      %913 = vrot.lane.b32.xlu0 %v912, 32
      %v914 = vpop.permute.xlu0 %913
      %v916 = vsel %vm415, %v405, %v914
      %v917 = vld [vmem:[%s3] sm:$0xff]
      %v918 = vld [vmem:[%s3 + $0x8] sm:$0xff]
      %v919 = vld [vmem:[%s3 + $0x10] sm:$0xff]
      %v920 = vld [vmem:[%s3 + $0x18] sm:$0xff]
      %v921 = vld [vmem:[%s3 + $0x20] sm:$0xff]
      %v922 = vld [vmem:[%s3 + $0x28] sm:$0xff]
      %v923 = vld [vmem:[%s3 + $0x30] sm:$0xff]
      %v924 = vld [vmem:[%s3 + $0x38] sm:$0xff]
      %v925 = vld [vmem:[%s5] sm:$0x1]
      %v926 = vlaneseq
      %v927 = vshrl.u32 %v926, 7
      %v928 = vsub.s32 0, %v927
      %v929 = vrot.slane %v925, %v928
      %vm930 = vcmask 523264
      %v932 = vsel %vm930, %v916, 0
      %934 = vmatprep.subr.mxu0 0.0
      %935 = vmatpush1.msra.mxu0 %v917
      %936 = vmatprep.subr.mxu0 0.0
      %937 = vmatpush1.msra.mxu0 %v918
      %938 = vmatprep.subr.mxu0 0.0
      %939 = vmatpush1.msra.mxu0 %v919
      %940 = vmatprep.subr.mxu0 0.0
      %941 = vmatpush1.msra.mxu0 %v920
      %942 = vmatprep.subr.mxu0 0.0
      %943 = vmatpush1.msra.mxu0 %v921
      %944 = vmatprep.subr.mxu0 0.0
      %945 = vmatpush1.msra.mxu0 %v922
      %946 = vmatprep.subr.mxu0 0.0
      %947 = vmatpush1.msra.mxu0 %v923
      %948 = vmatprep.subr.mxu0 0.0
      %949 = vmatpush1.msra.mxu0 %v924
      %950 = vmatprep.subr.mxu0 0.0
      %951 = vmatpush1.msra.mxu0 0.0
      %952 = vmatprep.subr.mxu0 0.0
      %953 = vmatpush1.msra.mxu0 0.0
      %954 = vmatprep.subr.mxu0 0.0
      %955 = vmatpush1.msra.mxu0 0.0
      %956 = vmatprep.subr.mxu0 0.0
      %957 = vmatpush1.msra.mxu0 0.0
      %958 = vmatprep.subr.mxu0 0.0
      %959 = vmatpush1.msra.mxu0 0.0
      %960 = vmatprep.subr.mxu0 0.0
      %961 = vmatpush1.msra.mxu0 0.0
      %962 = vmatprep.subr.mxu0 0.0
      %963 = vmatpush1.msra.mxu0 0.0
      %964 = vmatprep.subr.mxu0 0.0
      %965 = vmatpush1.msra.mxu0 0.0
      %966 = vmatprep.subr.mxu0 0.0
      %967 = vmatpush1.msra.mxu0 0.0
      %968 = vmatprep.subr.mxu0 0.0
      %969 = vmatpush1.msra.mxu0 0.0
      %970 = vmatprep.subr.mxu0 0.0
      %971 = vmatpush1.msra.mxu0 0.0
      %972 = vmatprep.subr.mxu0 0.0
      %973 = vmatpush1.msra.mxu0 0.0
      %974 = vmatprep.subr.mxu0 0.0
      %975 = vmatpush1.msra.mxu0 0.0
      %976 = vmatprep.subr.mxu0 0.0
      %977 = vmatpush1.msra.mxu0 0.0
      %978 = vmatprep.subr.mxu0 0.0
      %979 = vmatpush1.msra.mxu0 0.0
      %980 = vmatprep.subr.mxu0 0.0
      %981 = vmatpush1.msra.mxu0 0.0
      %982 = vmatprep.subr.mxu0 0.0
      %983 = vmatpush1.msra.mxu0 0.0
      %984 = vmatprep.subr.mxu0 0.0
      %985 = vmatpush1.msra.mxu0 0.0
      %986 = vmatprep.subr.mxu0 0.0
      %987 = vmatpush1.msra.mxu0 0.0
      %988 = vmatprep.subr.mxu0 0.0
      %989 = vmatpush1.msra.mxu0 0.0
      %990 = vmatprep.subr.mxu0 0.0
      %991 = vmatpush1.msra.mxu0 0.0
      %992 = vmatprep.subr.mxu0 0.0
      %993 = vmatpush1.msra.mxu0 0.0
      %994 = vmatprep.subr.mxu0 0.0
      %995 = vmatpush1.msra.mxu0 0.0
      %996 = vmatprep.subr.mxu0 0.0
      %997 = vmatpush1.msra.mxu0 0.0
      %998 = vmatprep.mubr.f32.mxu0 0.0
      %999 = vmatmul.mubr.f32.gmra.mrb[0].mxu0 %v932
      %v1000 = vpop.f32.mrb[0].mxu0
      %v1001 = vadd.f32 %v929, %v1000
      %v1002 = vpop.f32.mrb[0].mxu0
      %1003 = vdwg.mxu0
      %v1004 = vsel %vm415, %v1001, 0.0
      %1005 = vadd.xlane.f32.xlu0 %v1004
      %v1006 = vpop.xlane.xlu0 %1005
      %v1007 = vrcp.pop 32.0
      %v1008 = vmul.f32 %v1006, %v1007
      %v1009 = vsub.f32 %v1001, %v1008
      %v1010 = vmul.f32 %v1009, %v1009
      %v1011 = vsel %vm415, %v1010, 0.0
      %1012 = vadd.xlane.f32.xlu0 %v1011
      %v1013 = vpop.xlane.xlu0 %1012
      %v1014 = vmul.f32 %v1013, %v1007
      %v1015 = vadd.f32 %v1014, 1e-05
      %v1016 = vrsqrt.pop %v1015
      %v1017 = vmul.f32 %v1009, %v1016
      %v1018 = vld [vmem:[%s5 + $0x2] sm:$0x1]
      %v1019 = vlaneseq
      %v1020 = vshrl.u32 %v1019, 7
      %v1021 = vsub.s32 0, %v1020
      %v1022 = vrot.slane %v1018, %v1021
      %v1023 = vmul.f32 %v1017, %v1022
      %v1024 = vld [vmem:[%s5 + $0x3] sm:$0x1]
      %v1025 = vlaneseq
      %v1026 = vshrl.u32 %v1025, 7
      %v1027 = vsub.s32 0, %v1026
      %v1028 = vrot.slane %v1024, %v1027
      %v1029 = vadd.f32 %v1023, %v1028
      %v1030 = vmul.f32 %v1029, 0.5
      %v1031 = vmul.f32 %v1029, 0.70710677
      %v1032 = verf.f32.pop %v1031
      %v1033 = vadd.f32 %v1032, 1.0
      %v1034 = vmul.f32 %v1030, %v1033
      %v1035 = vld [vmem:[%s4] sm:$0xff]
      %v1036 = vld [vmem:[%s4 + $0x8] sm:$0xff]
      %v1037 = vld [vmem:[%s4 + $0x10] sm:$0xff]
      %v1038 = vld [vmem:[%s4 + $0x18] sm:$0xff]
      %v1039 = vld [vmem:[%s5 + $0x4] sm:$0x1]
      %v1040 = vlaneseq
      %v1041 = vshrl.u32 %v1040, 7
      %v1042 = vsub.s32 0, %v1041
      %v1043 = vrot.slane %v1039, %v1042
      %v1045 = vsel %vm415, %v1034, 0
      %1047 = vmatprep.subr.mxu0 0.0
      %1048 = vmatpush1.msra.mxu0 %v1035
      %1049 = vmatprep.subr.mxu0 0.0
      %1050 = vmatpush1.msra.mxu0 %v1036
      %1051 = vmatprep.subr.mxu0 0.0
      %1052 = vmatpush1.msra.mxu0 %v1037
      %1053 = vmatprep.subr.mxu0 0.0
      %1054 = vmatpush1.msra.mxu0 %v1038
      %1055 = vmatprep.subr.mxu0 0.0
      %1056 = vmatpush1.msra.mxu0 0.0
      %1057 = vmatprep.subr.mxu0 0.0
      %1058 = vmatpush1.msra.mxu0 0.0
      %1059 = vmatprep.subr.mxu0 0.0
      %1060 = vmatpush1.msra.mxu0 0.0
      %1061 = vmatprep.subr.mxu0 0.0
      %1062 = vmatpush1.msra.mxu0 0.0
      %1063 = vmatprep.subr.mxu0 0.0
      %1064 = vmatpush1.msra.mxu0 0.0
      %1065 = vmatprep.subr.mxu0 0.0
      %1066 = vmatpush1.msra.mxu0 0.0
      %1067 = vmatprep.subr.mxu0 0.0
      %1068 = vmatpush1.msra.mxu0 0.0
      %1069 = vmatprep.subr.mxu0 0.0
      %1070 = vmatpush1.msra.mxu0 0.0
      %1071 = vmatprep.subr.mxu0 0.0
      %1072 = vmatpush1.msra.mxu0 0.0
      %1073 = vmatprep.subr.mxu0 0.0
      %1074 = vmatpush1.msra.mxu0 0.0
      %1075 = vmatprep.subr.mxu0 0.0
      %1076 = vmatpush1.msra.mxu0 0.0
      %1077 = vmatprep.subr.mxu0 0.0
      %1078 = vmatpush1.msra.mxu0 0.0
      %1079 = vmatprep.subr.mxu0 0.0
      %1080 = vmatpush1.msra.mxu0 0.0
      %1081 = vmatprep.subr.mxu0 0.0
      %1082 = vmatpush1.msra.mxu0 0.0
      %1083 = vmatprep.subr.mxu0 0.0
      %1084 = vmatpush1.msra.mxu0 0.0
      %1085 = vmatprep.subr.mxu0 0.0
      %1086 = vmatpush1.msra.mxu0 0.0
      %1087 = vmatprep.subr.mxu0 0.0
      %1088 = vmatpush1.msra.mxu0 0.0
      %1089 = vmatprep.subr.mxu0 0.0
      %1090 = vmatpush1.msra.mxu0 0.0
      %1091 = vmatprep.subr.mxu0 0.0
      %1092 = vmatpush1.msra.mxu0 0.0
      %1093 = vmatprep.subr.mxu0 0.0
      %1094 = vmatpush1.msra.mxu0 0.0
      %1095 = vmatprep.subr.mxu0 0.0
      %1096 = vmatpush1.msra.mxu0 0.0
      %1097 = vmatprep.subr.mxu0 0.0
      %1098 = vmatpush1.msra.mxu0 0.0
      %1099 = vmatprep.subr.mxu0 0.0
      %1100 = vmatpush1.msra.mxu0 0.0
      %1101 = vmatprep.subr.mxu0 0.0
      %1102 = vmatpush1.msra.mxu0 0.0
      %1103 = vmatprep.subr.mxu0 0.0
      %1104 = vmatpush1.msra.mxu0 0.0
      %1105 = vmatprep.subr.mxu0 0.0
      %1106 = vmatpush1.msra.mxu0 0.0
      %1107 = vmatprep.subr.mxu0 0.0
      %1108 = vmatpush1.msra.mxu0 0.0
      %1109 = vmatprep.subr.mxu0 0.0
      %1110 = vmatpush1.msra.mxu0 0.0
      %1111 = vmatprep.mubr.f32.mxu0 0.0
      %1112 = vmatmul.mubr.f32.gmra.mrb[0].mxu0 %v1045
      %v1113 = vpop.f32.mrb[0].mxu0
      %v1114 = vadd.f32 %v1043, %v1113
      %v1115 = vpop.f32.mrb[0].mxu0
      %1116 = vdwg.mxu0
      %v1117 = vstv %s376
      %v1118 = vadd.s32 %v1117, %v381
      %v1119 = vadd.s32 %v1118, 5
      %vm1120 = vcmp.lt.s32.totalorder %v1119, 7
      %v1121 = vsel %vm1120, %v1119, 7
      %v1122 = vsub.s32 %v1118, 5
      %vm1123 = vcmp.gt.s32.totalorder %v1122, 0
      %v1124 = vsel %vm1123, %v1122, 0
      %v1125 = vsub.s32 %v1121, %v1124
      %v1126 = vadd.s32 %v1125, 1
      %v1127 = vmul.f32 %v1001, 0.5
      %v1128 = vmul.f32 %v1114, 0.5
      %1130 = vrot.lane.b32.xlu0 %v1128, 32
      %v1131 = vpop.permute.xlu0 %1130
      %v1133 = vadd.f32 %v1127, %v1131
      %vm1134 = vcmp.gt.s32.totalorder %v1126, 1
      %v1135 = vsel %vm1134, 1, 0
      %vm1136 = vcmp.eq.s32.totalorder %v1135, 1
      %v1137 = vsel %vm1136, %v1133, %v1001
      %1139 = vrot.lane.b32.xlu0 %v1137, 96
      %v1140 = vpop.permute.xlu0 %1139
      %vm1142 = vcmask 48128
      %1143 = vst.msk [vmem:[%s375] sm:$0xff] %vm1142, %v1140
      %p1144 = scmp.lt.s32.totalorder %s21, 1
      %s1145 = scalar_select %p1144, %s21, 1
      %p1146 = scmp.lt.s32.totalorder %s22, 0
      %s1147 = scalar_select %p1146, %s22, 0
      %s1148 = sadd.s32 %s1147, %s1145
      %s1149 = smul.addr %s1148, 8
      %s1150 = scalar_lea.vmem %s6, %s1149
      // Predicated region
      $region45: #{context_aware_span_classifier.1} parent=43 // pred_check
        %p1151 = pneg %p208
      $region46: #{context_aware_span_classifier.1} parent=43 // pred_check_branch
        %1153 = sbr.rel (%p1151) target = $region48
      $region47: #{context_aware_span_classifier.1} parent=43 // pred_region
        _
      $region48: #{context_aware_span_classifier.1} parent=43 // pred_fallthru
        _
    $region44: #{context_aware_span_classifier.1} parent=5 // pred_fallthru
      _
    %p1154 = scmp.le.s32.totalorder 2, %s12
    // Predicated region
    $region49: #{context_aware_span_classifier.1} parent=5 // pred_check
      %p1155 = pneg %p1154
    $region50: #{context_aware_span_classifier.1} parent=5 // pred_check_branch
      %1157 = sbr.rel (%p1155) target = $region52
    $region51: #{context_aware_span_classifier.1} parent=5 // pred_region
      %s1158 = ssub.s32 %s12, 2
      // Predicated region
      $region53: #{context_aware_span_classifier.1} parent=51 // pred_check
        %p1159 = pneg %p214
      $region54: #{context_aware_span_classifier.1} parent=51 // pred_check_branch
        %1161 = sbr.rel (%p1159) target = $region56
      $region55: #{context_aware_span_classifier.1} parent=51 // pred_region
        %p1162 = scmp.lt.s32.totalorder %s23, 1
        %s1163 = scalar_select %p1162, %s23, 1
        %p1164 = scmp.lt.s32.totalorder %s24, 0
        %s1165 = scalar_select %p1164, %s24, 0
        %s1166 = sadd.s32 %s1165, %s1163
        %s1167 = smul.addr %s1166, 8
        %s1168 = scalar_lea.vmem %s6, %s1167
      $region56: #{context_aware_span_classifier.1} parent=51 // pred_fallthru
        _
    $region52: #{context_aware_span_classifier.1} parent=5 // pred_fallthru
      _
  $region6: #{context_aware_span_classifier.1} parent=0 // loop_footer
    %s16 = sadd.s32 1, %s12
  $region7: #{context_aware_span_classifier.1} parent=0 // loop_footer_branch
    %11 = sbr.rel target = $region3
  $region8: #{context_aware_span_classifier.1} parent=0 // loop_exit
    _

</llo_original>
